<compile_context>
chip_gen: v5e
topology: v5e:2x2
jax: 0.10.0
libtpu: 0.0.40
codegen_flags: <defaults>
</compile_context>

<pallas_src>
import math

import jax
import jax.numpy as jnp
from jax import lax
from jax.experimental import pallas as pl
from jax.experimental.pallas import tpu as pltpu


EPS = 1e-6  # LayerNormalization default eps = 10**(-6)


# ---------------------------------------------------------------------------
# In-kernel LayerNorm: alpha * (x - mean) / (std + eps) + bias  (unbiased std)
# ---------------------------------------------------------------------------
def _layernorm(x, alpha, bias):
    d = x.shape[-1]
    mean = jnp.sum(x, axis=-1, keepdims=True) * jnp.float32(1.0 / d)
    xc = x - mean                                   # two-pass: no cancellation
    var = jnp.sum(xc * xc, axis=-1, keepdims=True) * jnp.float32(1.0 / (d - 1))
    std = jnp.sqrt(var)
    inv = pl.reciprocal(std + jnp.float32(EPS), approx=True)   # EUP, off the VALU
    return xc * (alpha * inv) + bias


# ---------------------------------------------------------------------------
# Fused EncoderBlock kernel (one grid step = one batch element)
# ---------------------------------------------------------------------------
def _make_encoder_block_kernel(num_heads, scale):
    def kernel(x_ref, mask_ref, n1a_ref, n1b_ref, wqkv_ref, wo_ref,
               n2a_ref, n2b_ref, w1_ref, b1_ref, w2_ref, b2_ref, o_ref):
        f32, bf16 = jnp.float32, jnp.bfloat16
        x = x_ref[0].astype(f32)                       # (S, D)
        S, D = x.shape
        dk = D // num_heads
        mask = mask_ref[0].astype(f32)                 # (1, S) key-validity mask

        # ---- residual 0: x = x + W_o(SelfAttention(LN1(x), mask)) ----------
        xn = _layernorm(x, n1a_ref[...].astype(f32), n1b_ref[...].astype(f32))
        qkv = jnp.dot(xn.astype(bf16), wqkv_ref[...],
                      preferred_element_type=f32)      # (S, 3D), f32 accum

        for hd in range(num_heads):                    # static unrolled head loop
            q_h = qkv[:, hd * dk:(hd + 1) * dk]
            k_h = qkv[:, D + hd * dk:D + (hd + 1) * dk]
            v_h = qkv[:, 2 * D + hd * dk:2 * D + (hd + 1) * dk]
            # MXU consumes the transposed-B contraction natively (no k.T relayout).
            s = lax.dot_general(q_h.astype(bf16), k_h.astype(bf16),
                                (((1,), (1,)), ((), ())),
                                preferred_element_type=f32)      # (S, S)
            s = s * jnp.float32(scale)
            s = jnp.where(mask == 0, jnp.float32(-1e9), s)       # broadcast (1,S)
            smax = jnp.max(s, axis=-1, keepdims=True)
            p = jnp.exp(s - smax)
            denom = jnp.sum(p, axis=-1, keepdims=True)
            p = p * pl.reciprocal(denom, approx=True)
            o_h = jnp.dot(p.astype(bf16), v_h.astype(bf16),
                          preferred_element_type=f32)            # (S, dk)
            # Accumulate the W_o projection per head (tile-aligned row slice of W_o):
            # sum_h o_h @ W_o[h*dk:(h+1)*dk, :]  ==  concat(o_h) @ W_o.
            x = x + jnp.dot(o_h.astype(bf16),
                            wo_ref[hd * dk:(hd + 1) * dk, :],
                            preferred_element_type=f32)

        # ---- residual 1: x = x + FFN(LN2(x)) --------------------------------
        xn = _layernorm(x, n2a_ref[...].astype(f32), n2b_ref[...].astype(f32))
        hid = jnp.dot(xn.astype(bf16), w1_ref[...],
                      preferred_element_type=f32) + b1_ref[...].astype(f32)
        hid = jnp.maximum(hid, jnp.float32(0.0))
        x = x + (jnp.dot(hid.astype(bf16), w2_ref[...],
                         preferred_element_type=f32) + b2_ref[...].astype(f32))

        o_ref[0] = x.astype(o_ref.dtype)               # lane-dense (S, D) store

    return kernel


def encoder_block_forward(x, src_mask, params, h):
    """x: (B, S, D); src_mask broadcastable to (B, 1, 1, S) or None."""
    B, S, D = x.shape
    assert D % h == 0
    dk = D // h
    d_ff = params["w1"].shape[1]
    bf16 = jnp.bfloat16

    # Fused QKV weight (D, 3D); all matmul weights shipped as bf16 (halves DMA
    # bytes, native MXU dtype on v6e/v7x). Accumulation stays f32 in-kernel.
    w_qkv = jnp.concatenate(
        [params["w_q"], params["w_k"], params["w_v"]], axis=1).astype(bf16)
    w_o = params["w_o"].astype(bf16)
    w1 = params["w1"].astype(bf16)
    w2 = params["w2"].astype(bf16)

    if src_mask is None:
        mask = jnp.ones((B, 1, S), dtype=jnp.float32)
    else:
        mask = jnp.broadcast_to(src_mask.astype(jnp.float32),
                                (B, 1, 1, S)).reshape(B, 1, S)

    def const_spec(shape):
        # Weight blocks: constant index_map -> DMA'd once, resident across grid.
        return pl.BlockSpec(shape, lambda b: (0, 0))

    kernel = _make_encoder_block_kernel(h, 1.0 / math.sqrt(dk))

    # Working set per step: x/out tiles (8,128) f32 + weights (~0.3 MiB bf16)
    # + tiny params — far below the scoped-VMEM default on all of v5e/v6e/v7x.
    return pl.pallas_call(
        kernel,
        out_shape=jax.ShapeDtypeStruct((B, S, D), x.dtype),
        grid_spec=pltpu.PrefetchScalarGridSpec(
            num_scalar_prefetch=0,
            grid=(B,),
            in_specs=[
                pl.BlockSpec((1, S, D), lambda b: (b, 0, 0)),   # x
                pl.BlockSpec((1, 1, S), lambda b: (b, 0, 0)),   # key mask
                const_spec((1, D)),                             # norm1 alpha
                const_spec((1, D)),                             # norm1 bias
                const_spec((D, 3 * D)),                         # w_qkv
                const_spec((D, D)),                             # w_o
                const_spec((1, D)),                             # norm2 alpha
                const_spec((1, D)),                             # norm2 bias
                const_spec((D, d_ff)),                          # w1
                const_spec((1, d_ff)),                          # b1
                const_spec((d_ff, D)),                          # w2
                const_spec((1, D)),                             # b2
            ],
            out_specs=pl.BlockSpec((1, S, D), lambda b: (b, 0, 0)),
        ),
        compiler_params=pltpu.CompilerParams(
            dimension_semantics=("parallel",)),  # batch rows -> both TCs on v7x
    )(x, mask,
      params["norm1_alpha"].reshape(1, D), params["norm1_bias"].reshape(1, D),
      w_qkv, w_o,
      params["norm2_alpha"].reshape(1, D), params["norm2_bias"].reshape(1, D),
      w1, params["b1"].reshape(1, d_ff),
      w2, params["b2"].reshape(1, D))


# ---------------------------------------------------------------------------
# Pure-JAX reference (torch semantics) for verification
# ---------------------------------------------------------------------------
def _ref_layernorm(x, alpha, bias):
    mean = jnp.mean(x, axis=-1, keepdims=True)
    std = jnp.std(x, axis=-1, keepdims=True, ddof=1)  # torch unbiased std
    return alpha * (x - mean) / (std + EPS) + bias


def _ref_encoder_block(x, src_mask, params, h):
    hi = jax.lax.Precision.HIGHEST
    B, S, D = x.shape
    dk = D // h

    def lin(a, w, b=None):
        y = jnp.dot(a, w, precision=hi)
        return y if b is None else y + b

    xn = _ref_layernorm(x, params["norm1_alpha"], params["norm1_bias"])
    q = lin(xn, params["w_q"]).reshape(B, S, h, dk).transpose(0, 2, 1, 3)
    k = lin(xn, params["w_k"]).reshape(B, S, h, dk).transpose(0, 2, 1, 3)
    v = lin(xn, params["w_v"]).reshape(B, S, h, dk).transpose(0, 2, 1, 3)
    scores = jnp.einsum("bhqd,bhkd->bhqk", q, k, precision=hi) / math.sqrt(dk)
    scores = jnp.where(src_mask == 0, -1e9, scores)
    attn = jax.nn.softmax(scores, axis=-1)
    o = jnp.einsum("bhqk,bhkd->bhqd", attn, v, precision=hi)
    o = o.transpose(0, 2, 1, 3).reshape(B, S, D)
    x = x + lin(o, params["w_o"])
    xn = _ref_layernorm(x, params["norm2_alpha"], params["norm2_bias"])
    hid = jnp.maximum(lin(xn, params["w1"], params["b1"]), 0.0)
    x = x + lin(hid, params["w2"], params["b2"])
    return x


if __name__ == "__main__":
    # Small but lane-dense shapes: d_model multiple of 128 (unmasked stores).
    B, S, D_MODEL, H, D_FF = 2, 8, 128, 4, 256

    key = jax.random.PRNGKey(0)
    ks = jax.random.split(key, 13)
    w_scale = 0.08

    x = jax.random.normal(ks[0], (B, S, D_MODEL), dtype=jnp.float32)
    # Padding mask: last 2 source positions masked out for every sequence.
    valid = (jnp.arange(S) < S - 2).astype(jnp.float32)
    src_mask = jnp.broadcast_to(valid[None, None, None, :], (B, 1, 1, S))

    params = {
        "w_q": w_scale * jax.random.normal(ks[1], (D_MODEL, D_MODEL), jnp.float32),
        "w_k": w_scale * jax.random.normal(ks[2], (D_MODEL, D_MODEL), jnp.float32),
        "w_v": w_scale * jax.random.normal(ks[3], (D_MODEL, D_MODEL), jnp.float32),
        "w_o": w_scale * jax.random.normal(ks[4], (D_MODEL, D_MODEL), jnp.float32),
        "w1": w_scale * jax.random.normal(ks[5], (D_MODEL, D_FF), jnp.float32),
        "b1": w_scale * jax.random.normal(ks[6], (D_FF,), jnp.float32),
        "w2": w_scale * jax.random.normal(ks[7], (D_FF, D_MODEL), jnp.float32),
        "b2": w_scale * jax.random.normal(ks[8], (D_MODEL,), jnp.float32),
        "norm1_alpha": 1.0 + 0.1 * jax.random.normal(ks[9], (D_MODEL,), jnp.float32),
        "norm1_bias": 0.1 * jax.random.normal(ks[10], (D_MODEL,), jnp.float32),
        "norm2_alpha": 1.0 + 0.1 * jax.random.normal(ks[11], (D_MODEL,), jnp.float32),
        "norm2_bias": 0.1 * jax.random.normal(ks[12], (D_MODEL,), jnp.float32),
    }

    out = encoder_block_forward(x, src_mask, params, h=H)
    out = jax.block_until_ready(out)

    ref = _ref_encoder_block(x, src_mask, params, h=H)
    assert out.shape == (B, S, D_MODEL)
    max_err = float(jnp.max(jnp.abs(out - ref)))
    # Tolerance covers bf16 MXU inputs + approx reciprocal (f32 accumulation).
    assert jnp.allclose(out, ref, atol=3e-2, rtol=3e-2), f"max abs err {max_err}"

    print("KERNEL_OK")
</pallas_src>

<mosaic_0001>
module attributes {stable_mosaic.version = 11 : i64} {
  func.func @kernel(%arg0: i32, %arg1: memref<1x8x128xf32, #tpu.memory_space<vmem>>, %arg2: memref<1x1x8xf32, #tpu.memory_space<vmem>>, %arg3: memref<1x128xf32, #tpu.memory_space<vmem>>, %arg4: memref<1x128xf32, #tpu.memory_space<vmem>>, %arg5: memref<128x384xbf16, #tpu.memory_space<vmem>>, %arg6: memref<128x128xbf16, #tpu.memory_space<vmem>>, %arg7: memref<1x128xf32, #tpu.memory_space<vmem>>, %arg8: memref<1x128xf32, #tpu.memory_space<vmem>>, %arg9: memref<128x256xbf16, #tpu.memory_space<vmem>>, %arg10: memref<1x256xf32, #tpu.memory_space<vmem>>, %arg11: memref<256x128xbf16, #tpu.memory_space<vmem>>, %arg12: memref<1x128xf32, #tpu.memory_space<vmem>>, %arg13: memref<1x8x128xf32, #tpu.memory_space<vmem>>) attributes {dimension_semantics = [#tpu.dimension_semantics<parallel>], iteration_bounds = array<i64: 2>, scalar_prefetch = 0 : i64, scratch_operands = 0 : i64, tpu.core_type = #tpu.core_type<tc>, window_params = [{transform_indices = @transform_0, window_bounds = array<i64: 1, 8, 128>}, {transform_indices = @transform_1, window_bounds = array<i64: 1, 1, 8>}, {pipeline_mode = #tpu.pipeline_mode<synchronous>, transform_indices = @transform_2, window_bounds = array<i64: 1, 128>}, {pipeline_mode = #tpu.pipeline_mode<synchronous>, transform_indices = @transform_3, window_bounds = array<i64: 1, 128>}, {pipeline_mode = #tpu.pipeline_mode<synchronous>, transform_indices = @transform_4, window_bounds = array<i64: 128, 384>}, {pipeline_mode = #tpu.pipeline_mode<synchronous>, transform_indices = @transform_5, window_bounds = array<i64: 128, 128>}, {pipeline_mode = #tpu.pipeline_mode<synchronous>, transform_indices = @transform_6, window_bounds = array<i64: 1, 128>}, {pipeline_mode = #tpu.pipeline_mode<synchronous>, transform_indices = @transform_7, window_bounds = array<i64: 1, 128>}, {pipeline_mode = #tpu.pipeline_mode<synchronous>, transform_indices = @transform_8, window_bounds = array<i64: 128, 256>}, {pipeline_mode = #tpu.pipeline_mode<synchronous>, transform_indices = @transform_9, window_bounds = array<i64: 1, 256>}, {pipeline_mode = #tpu.pipeline_mode<synchronous>, transform_indices = @transform_10, window_bounds = array<i64: 256, 128>}, {pipeline_mode = #tpu.pipeline_mode<synchronous>, transform_indices = @transform_11, window_bounds = array<i64: 1, 128>}, {transform_indices = @transform_12, window_bounds = array<i64: 1, 8, 128>}]} {
    %c0 = arith.constant 0 : index
    %c0_0 = arith.constant 0 : index
    %c0_1 = arith.constant 0 : index
    %0 = vector.load %arg1[%c0, %c0_0, %c0_1] : memref<1x8x128xf32, #tpu.memory_space<vmem>>, vector<1x8x128xf32>
    %1 = vector.shape_cast %0 : vector<1x8x128xf32> to vector<8x128xf32>
    %c0_2 = arith.constant 0 : index
    %c0_3 = arith.constant 0 : index
    %c0_4 = arith.constant 0 : index
    %2 = vector.load %arg2[%c0_2, %c0_3, %c0_4] : memref<1x1x8xf32, #tpu.memory_space<vmem>>, vector<1x1x8xf32>
    %3 = vector.shape_cast %2 : vector<1x1x8xf32> to vector<1x8xf32>
    %c0_5 = arith.constant 0 : index
    %c0_6 = arith.constant 0 : index
    %4 = vector.load %arg3[%c0_5, %c0_6] : memref<1x128xf32, #tpu.memory_space<vmem>>, vector<1x128xf32>
    %c0_7 = arith.constant 0 : index
    %c0_8 = arith.constant 0 : index
    %5 = vector.load %arg4[%c0_7, %c0_8] : memref<1x128xf32, #tpu.memory_space<vmem>>, vector<1x128xf32>
    %cst = arith.constant dense<0.000000e+00> : vector<8xf32>
    %6 = vector.multi_reduction <add>, %1, %cst [1] : vector<8x128xf32> to vector<8xf32>
    %7 = vector.shape_cast %6 : vector<8xf32> to vector<8x1xf32>
    %cst_9 = arith.constant 7.812500e-03 : f32
    %8 = vector.broadcast %cst_9 : f32 to vector<8x1xf32>
    %9 = arith.mulf %7, %8 : vector<8x1xf32>
    %10 = vector.broadcast %9 : vector<8x1xf32> to vector<8x128xf32>
    %11 = arith.subf %1, %10 : vector<8x128xf32>
    %12 = arith.mulf %11, %11 : vector<8x128xf32>
    %cst_10 = arith.constant dense<0.000000e+00> : vector<8xf32>
    %13 = vector.multi_reduction <add>, %12, %cst_10 [1] : vector<8x128xf32> to vector<8xf32>
    %14 = vector.shape_cast %13 : vector<8xf32> to vector<8x1xf32>
    %cst_11 = arith.constant 0.00787401571 : f32
    %15 = vector.broadcast %cst_11 : f32 to vector<8x1xf32>
    %16 = arith.mulf %14, %15 : vector<8x1xf32>
    %17 = math.sqrt %16 : vector<8x1xf32>
    %cst_12 = arith.constant 9.99999997E-7 : f32
    %18 = vector.broadcast %cst_12 : f32 to vector<8x1xf32>
    %19 = arith.addf %17, %18 : vector<8x1xf32>
    %20 = tpu.reciprocal %19 {approx = true} : vector<8x1xf32> -> vector<8x1xf32>
    %21 = vector.broadcast %4 : vector<1x128xf32> to vector<8x128xf32>
    %22 = vector.broadcast %20 : vector<8x1xf32> to vector<8x128xf32>
    %23 = arith.mulf %21, %22 : vector<8x128xf32>
    %24 = arith.mulf %11, %23 : vector<8x128xf32>
    %25 = vector.broadcast %5 : vector<1x128xf32> to vector<8x128xf32>
    %26 = arith.addf %24, %25 : vector<8x128xf32>
    %27 = arith.truncf %26 : vector<8x128xf32> to vector<8x128xbf16>
    %c0_13 = arith.constant 0 : index
    %c0_14 = arith.constant 0 : index
    %28 = vector.load %arg5[%c0_13, %c0_14] : memref<128x384xbf16, #tpu.memory_space<vmem>>, vector<128x384xbf16>
    %cst_15 = arith.constant dense<0.000000e+00> : vector<8x384xf32>
    %29 = tpu.matmul %27, %28, %cst_15 {dimension_numbers = #tpu.dot_dimension_numbers<[1], [0], [0], [1], [0, 0, 1, 1], [], []>} : vector<8x128xbf16>, vector<128x384xbf16>, vector<8x384xf32> -> vector<8x384xf32>
    %30 = vector.extract_strided_slice %29 {offsets = [0, 0], sizes = [8, 32], strides = [1, 1]} : vector<8x384xf32> to vector<8x32xf32>
    %31 = vector.extract_strided_slice %29 {offsets = [0, 128], sizes = [8, 32], strides = [1, 1]} : vector<8x384xf32> to vector<8x32xf32>
    %32 = vector.extract_strided_slice %29 {offsets = [0, 256], sizes = [8, 32], strides = [1, 1]} : vector<8x384xf32> to vector<8x32xf32>
    %33 = arith.truncf %30 : vector<8x32xf32> to vector<8x32xbf16>
    %34 = arith.truncf %31 : vector<8x32xf32> to vector<8x32xbf16>
    %cst_16 = arith.constant dense<0.000000e+00> : vector<8x8xf32>
    %35 = tpu.matmul %33, %34, %cst_16 {dimension_numbers = #tpu.dot_dimension_numbers<[1], [1], [0], [0], [0, 0, 1, 0], [], []>} : vector<8x32xbf16>, vector<8x32xbf16>, vector<8x8xf32> -> vector<8x8xf32>
    %cst_17 = arith.constant 0.176776692 : f32
    %36 = vector.broadcast %cst_17 : f32 to vector<8x8xf32>
    %37 = arith.mulf %35, %36 : vector<8x8xf32>
    %cst_18 = arith.constant 0.000000e+00 : f32
    %38 = vector.broadcast %cst_18 : f32 to vector<1x8xf32>
    %39 = arith.cmpf oeq, %3, %38 : vector<1x8xf32>
    %cst_19 = arith.constant -1.000000e+09 : f32
    %40 = vector.shape_cast %39 : vector<1x8xi1> to vector<1x8xi1>
    %41 = vector.broadcast %40 : vector<1x8xi1> to vector<8x8xi1>
    %42 = vector.broadcast %cst_19 : f32 to vector<8x8xf32>
    %43 = arith.select %41, %42, %37 : vector<8x8xi1>, vector<8x8xf32>
    %cst_20 = arith.constant dense<0xFF800000> : vector<8xf32>
    %44 = vector.multi_reduction <maximumf>, %43, %cst_20 [1] : vector<8x8xf32> to vector<8xf32>
    %45 = vector.shape_cast %44 : vector<8xf32> to vector<8x1xf32>
    %46 = vector.broadcast %45 : vector<8x1xf32> to vector<8x8xf32>
    %47 = arith.subf %43, %46 : vector<8x8xf32>
    %48 = math.exp %47 : vector<8x8xf32>
    %cst_21 = arith.constant dense<0.000000e+00> : vector<8xf32>
    %49 = vector.multi_reduction <add>, %48, %cst_21 [1] : vector<8x8xf32> to vector<8xf32>
    %50 = vector.shape_cast %49 : vector<8xf32> to vector<8x1xf32>
    %51 = tpu.reciprocal %50 {approx = true} : vector<8x1xf32> -> vector<8x1xf32>
    %52 = vector.broadcast %51 : vector<8x1xf32> to vector<8x8xf32>
    %53 = arith.mulf %48, %52 : vector<8x8xf32>
    %54 = arith.truncf %53 : vector<8x8xf32> to vector<8x8xbf16>
    %55 = arith.truncf %32 : vector<8x32xf32> to vector<8x32xbf16>
    %cst_22 = arith.constant dense<0.000000e+00> : vector<8x32xf32>
    %56 = tpu.matmul %54, %55, %cst_22 {dimension_numbers = #tpu.dot_dimension_numbers<[1], [0], [0], [1], [0, 0, 1, 1], [], []>} : vector<8x8xbf16>, vector<8x32xbf16>, vector<8x32xf32> -> vector<8x32xf32>
    %57 = arith.truncf %56 : vector<8x32xf32> to vector<8x32xbf16>
    %c0_23 = arith.constant 0 : index
    %c0_24 = arith.constant 0 : index
    %58 = vector.load %arg6[%c0_23, %c0_24] : memref<128x128xbf16, #tpu.memory_space<vmem>>, vector<32x128xbf16>
    %cst_25 = arith.constant dense<0.000000e+00> : vector<8x128xf32>
    %59 = tpu.matmul %57, %58, %cst_25 {dimension_numbers = #tpu.dot_dimension_numbers<[1], [0], [0], [1], [0, 0, 1, 1], [], []>} : vector<8x32xbf16>, vector<32x128xbf16>, vector<8x128xf32> -> vector<8x128xf32>
    %60 = arith.addf %1, %59 : vector<8x128xf32>
    %61 = vector.extract_strided_slice %29 {offsets = [0, 32], sizes = [8, 32], strides = [1, 1]} : vector<8x384xf32> to vector<8x32xf32>
    %62 = vector.extract_strided_slice %29 {offsets = [0, 160], sizes = [8, 32], strides = [1, 1]} : vector<8x384xf32> to vector<8x32xf32>
    %63 = vector.extract_strided_slice %29 {offsets = [0, 288], sizes = [8, 32], strides = [1, 1]} : vector<8x384xf32> to vector<8x32xf32>
    %64 = arith.truncf %61 : vector<8x32xf32> to vector<8x32xbf16>
    %65 = arith.truncf %62 : vector<8x32xf32> to vector<8x32xbf16>
    %cst_26 = arith.constant dense<0.000000e+00> : vector<8x8xf32>
    %66 = tpu.matmul %64, %65, %cst_26 {dimension_numbers = #tpu.dot_dimension_numbers<[1], [1], [0], [0], [0, 0, 1, 0], [], []>} : vector<8x32xbf16>, vector<8x32xbf16>, vector<8x8xf32> -> vector<8x8xf32>
    %cst_27 = arith.constant 0.176776692 : f32
    %67 = vector.broadcast %cst_27 : f32 to vector<8x8xf32>
    %68 = arith.mulf %66, %67 : vector<8x8xf32>
    %cst_28 = arith.constant 0.000000e+00 : f32
    %69 = vector.broadcast %cst_28 : f32 to vector<1x8xf32>
    %70 = arith.cmpf oeq, %3, %69 : vector<1x8xf32>
    %cst_29 = arith.constant -1.000000e+09 : f32
    %71 = vector.shape_cast %70 : vector<1x8xi1> to vector<1x8xi1>
    %72 = vector.broadcast %71 : vector<1x8xi1> to vector<8x8xi1>
    %73 = vector.broadcast %cst_29 : f32 to vector<8x8xf32>
    %74 = arith.select %72, %73, %68 : vector<8x8xi1>, vector<8x8xf32>
    %cst_30 = arith.constant dense<0xFF800000> : vector<8xf32>
    %75 = vector.multi_reduction <maximumf>, %74, %cst_30 [1] : vector<8x8xf32> to vector<8xf32>
    %76 = vector.shape_cast %75 : vector<8xf32> to vector<8x1xf32>
    %77 = vector.broadcast %76 : vector<8x1xf32> to vector<8x8xf32>
    %78 = arith.subf %74, %77 : vector<8x8xf32>
    %79 = math.exp %78 : vector<8x8xf32>
    %cst_31 = arith.constant dense<0.000000e+00> : vector<8xf32>
    %80 = vector.multi_reduction <add>, %79, %cst_31 [1] : vector<8x8xf32> to vector<8xf32>
    %81 = vector.shape_cast %80 : vector<8xf32> to vector<8x1xf32>
    %82 = tpu.reciprocal %81 {approx = true} : vector<8x1xf32> -> vector<8x1xf32>
    %83 = vector.broadcast %82 : vector<8x1xf32> to vector<8x8xf32>
    %84 = arith.mulf %79, %83 : vector<8x8xf32>
    %85 = arith.truncf %84 : vector<8x8xf32> to vector<8x8xbf16>
    %86 = arith.truncf %63 : vector<8x32xf32> to vector<8x32xbf16>
    %cst_32 = arith.constant dense<0.000000e+00> : vector<8x32xf32>
    %87 = tpu.matmul %85, %86, %cst_32 {dimension_numbers = #tpu.dot_dimension_numbers<[1], [0], [0], [1], [0, 0, 1, 1], [], []>} : vector<8x8xbf16>, vector<8x32xbf16>, vector<8x32xf32> -> vector<8x32xf32>
    %88 = arith.truncf %87 : vector<8x32xf32> to vector<8x32xbf16>
    %c32 = arith.constant 32 : index
    %c0_33 = arith.constant 0 : index
    %89 = vector.load %arg6[%c32, %c0_33] : memref<128x128xbf16, #tpu.memory_space<vmem>>, vector<32x128xbf16>
    %cst_34 = arith.constant dense<0.000000e+00> : vector<8x128xf32>
    %90 = tpu.matmul %88, %89, %cst_34 {dimension_numbers = #tpu.dot_dimension_numbers<[1], [0], [0], [1], [0, 0, 1, 1], [], []>} : vector<8x32xbf16>, vector<32x128xbf16>, vector<8x128xf32> -> vector<8x128xf32>
    %91 = arith.addf %60, %90 : vector<8x128xf32>
    %92 = vector.extract_strided_slice %29 {offsets = [0, 64], sizes = [8, 32], strides = [1, 1]} : vector<8x384xf32> to vector<8x32xf32>
    %93 = vector.extract_strided_slice %29 {offsets = [0, 192], sizes = [8, 32], strides = [1, 1]} : vector<8x384xf32> to vector<8x32xf32>
    %94 = vector.extract_strided_slice %29 {offsets = [0, 320], sizes = [8, 32], strides = [1, 1]} : vector<8x384xf32> to vector<8x32xf32>
    %95 = arith.truncf %92 : vector<8x32xf32> to vector<8x32xbf16>
    %96 = arith.truncf %93 : vector<8x32xf32> to vector<8x32xbf16>
    %cst_35 = arith.constant dense<0.000000e+00> : vector<8x8xf32>
    %97 = tpu.matmul %95, %96, %cst_35 {dimension_numbers = #tpu.dot_dimension_numbers<[1], [1], [0], [0], [0, 0, 1, 0], [], []>} : vector<8x32xbf16>, vector<8x32xbf16>, vector<8x8xf32> -> vector<8x8xf32>
    %cst_36 = arith.constant 0.176776692 : f32
    %98 = vector.broadcast %cst_36 : f32 to vector<8x8xf32>
    %99 = arith.mulf %97, %98 : vector<8x8xf32>
    %cst_37 = arith.constant 0.000000e+00 : f32
    %100 = vector.broadcast %cst_37 : f32 to vector<1x8xf32>
    %101 = arith.cmpf oeq, %3, %100 : vector<1x8xf32>
    %cst_38 = arith.constant -1.000000e+09 : f32
    %102 = vector.shape_cast %101 : vector<1x8xi1> to vector<1x8xi1>
    %103 = vector.broadcast %102 : vector<1x8xi1> to vector<8x8xi1>
    %104 = vector.broadcast %cst_38 : f32 to vector<8x8xf32>
    %105 = arith.select %103, %104, %99 : vector<8x8xi1>, vector<8x8xf32>
    %cst_39 = arith.constant dense<0xFF800000> : vector<8xf32>
    %106 = vector.multi_reduction <maximumf>, %105, %cst_39 [1] : vector<8x8xf32> to vector<8xf32>
    %107 = vector.shape_cast %106 : vector<8xf32> to vector<8x1xf32>
    %108 = vector.broadcast %107 : vector<8x1xf32> to vector<8x8xf32>
    %109 = arith.subf %105, %108 : vector<8x8xf32>
    %110 = math.exp %109 : vector<8x8xf32>
    %cst_40 = arith.constant dense<0.000000e+00> : vector<8xf32>
    %111 = vector.multi_reduction <add>, %110, %cst_40 [1] : vector<8x8xf32> to vector<8xf32>
    %112 = vector.shape_cast %111 : vector<8xf32> to vector<8x1xf32>
    %113 = tpu.reciprocal %112 {approx = true} : vector<8x1xf32> -> vector<8x1xf32>
    %114 = vector.broadcast %113 : vector<8x1xf32> to vector<8x8xf32>
    %115 = arith.mulf %110, %114 : vector<8x8xf32>
    %116 = arith.truncf %115 : vector<8x8xf32> to vector<8x8xbf16>
    %117 = arith.truncf %94 : vector<8x32xf32> to vector<8x32xbf16>
    %cst_41 = arith.constant dense<0.000000e+00> : vector<8x32xf32>
    %118 = tpu.matmul %116, %117, %cst_41 {dimension_numbers = #tpu.dot_dimension_numbers<[1], [0], [0], [1], [0, 0, 1, 1], [], []>} : vector<8x8xbf16>, vector<8x32xbf16>, vector<8x32xf32> -> vector<8x32xf32>
    %119 = arith.truncf %118 : vector<8x32xf32> to vector<8x32xbf16>
    %c64 = arith.constant 64 : index
    %c0_42 = arith.constant 0 : index
    %120 = vector.load %arg6[%c64, %c0_42] : memref<128x128xbf16, #tpu.memory_space<vmem>>, vector<32x128xbf16>
    %cst_43 = arith.constant dense<0.000000e+00> : vector<8x128xf32>
    %121 = tpu.matmul %119, %120, %cst_43 {dimension_numbers = #tpu.dot_dimension_numbers<[1], [0], [0], [1], [0, 0, 1, 1], [], []>} : vector<8x32xbf16>, vector<32x128xbf16>, vector<8x128xf32> -> vector<8x128xf32>
    %122 = arith.addf %91, %121 : vector<8x128xf32>
    %123 = vector.extract_strided_slice %29 {offsets = [0, 96], sizes = [8, 32], strides = [1, 1]} : vector<8x384xf32> to vector<8x32xf32>
    %124 = vector.extract_strided_slice %29 {offsets = [0, 224], sizes = [8, 32], strides = [1, 1]} : vector<8x384xf32> to vector<8x32xf32>
    %125 = vector.extract_strided_slice %29 {offsets = [0, 352], sizes = [8, 32], strides = [1, 1]} : vector<8x384xf32> to vector<8x32xf32>
    %126 = arith.truncf %123 : vector<8x32xf32> to vector<8x32xbf16>
    %127 = arith.truncf %124 : vector<8x32xf32> to vector<8x32xbf16>
    %cst_44 = arith.constant dense<0.000000e+00> : vector<8x8xf32>
    %128 = tpu.matmul %126, %127, %cst_44 {dimension_numbers = #tpu.dot_dimension_numbers<[1], [1], [0], [0], [0, 0, 1, 0], [], []>} : vector<8x32xbf16>, vector<8x32xbf16>, vector<8x8xf32> -> vector<8x8xf32>
    %cst_45 = arith.constant 0.176776692 : f32
    %129 = vector.broadcast %cst_45 : f32 to vector<8x8xf32>
    %130 = arith.mulf %128, %129 : vector<8x8xf32>
    %cst_46 = arith.constant 0.000000e+00 : f32
    %131 = vector.broadcast %cst_46 : f32 to vector<1x8xf32>
    %132 = arith.cmpf oeq, %3, %131 : vector<1x8xf32>
    %cst_47 = arith.constant -1.000000e+09 : f32
    %133 = vector.shape_cast %132 : vector<1x8xi1> to vector<1x8xi1>
    %134 = vector.broadcast %133 : vector<1x8xi1> to vector<8x8xi1>
    %135 = vector.broadcast %cst_47 : f32 to vector<8x8xf32>
    %136 = arith.select %134, %135, %130 : vector<8x8xi1>, vector<8x8xf32>
    %cst_48 = arith.constant dense<0xFF800000> : vector<8xf32>
    %137 = vector.multi_reduction <maximumf>, %136, %cst_48 [1] : vector<8x8xf32> to vector<8xf32>
    %138 = vector.shape_cast %137 : vector<8xf32> to vector<8x1xf32>
    %139 = vector.broadcast %138 : vector<8x1xf32> to vector<8x8xf32>
    %140 = arith.subf %136, %139 : vector<8x8xf32>
    %141 = math.exp %140 : vector<8x8xf32>
    %cst_49 = arith.constant dense<0.000000e+00> : vector<8xf32>
    %142 = vector.multi_reduction <add>, %141, %cst_49 [1] : vector<8x8xf32> to vector<8xf32>
    %143 = vector.shape_cast %142 : vector<8xf32> to vector<8x1xf32>
    %144 = tpu.reciprocal %143 {approx = true} : vector<8x1xf32> -> vector<8x1xf32>
    %145 = vector.broadcast %144 : vector<8x1xf32> to vector<8x8xf32>
    %146 = arith.mulf %141, %145 : vector<8x8xf32>
    %147 = arith.truncf %146 : vector<8x8xf32> to vector<8x8xbf16>
    %148 = arith.truncf %125 : vector<8x32xf32> to vector<8x32xbf16>
    %cst_50 = arith.constant dense<0.000000e+00> : vector<8x32xf32>
    %149 = tpu.matmul %147, %148, %cst_50 {dimension_numbers = #tpu.dot_dimension_numbers<[1], [0], [0], [1], [0, 0, 1, 1], [], []>} : vector<8x8xbf16>, vector<8x32xbf16>, vector<8x32xf32> -> vector<8x32xf32>
    %150 = arith.truncf %149 : vector<8x32xf32> to vector<8x32xbf16>
    %c96 = arith.constant 96 : index
    %c0_51 = arith.constant 0 : index
    %151 = vector.load %arg6[%c96, %c0_51] : memref<128x128xbf16, #tpu.memory_space<vmem>>, vector<32x128xbf16>
    %cst_52 = arith.constant dense<0.000000e+00> : vector<8x128xf32>
    %152 = tpu.matmul %150, %151, %cst_52 {dimension_numbers = #tpu.dot_dimension_numbers<[1], [0], [0], [1], [0, 0, 1, 1], [], []>} : vector<8x32xbf16>, vector<32x128xbf16>, vector<8x128xf32> -> vector<8x128xf32>
    %153 = arith.addf %122, %152 : vector<8x128xf32>
    %c0_53 = arith.constant 0 : index
    %c0_54 = arith.constant 0 : index
    %154 = vector.load %arg7[%c0_53, %c0_54] : memref<1x128xf32, #tpu.memory_space<vmem>>, vector<1x128xf32>
    %c0_55 = arith.constant 0 : index
    %c0_56 = arith.constant 0 : index
    %155 = vector.load %arg8[%c0_55, %c0_56] : memref<1x128xf32, #tpu.memory_space<vmem>>, vector<1x128xf32>
    %cst_57 = arith.constant dense<0.000000e+00> : vector<8xf32>
    %156 = vector.multi_reduction <add>, %153, %cst_57 [1] : vector<8x128xf32> to vector<8xf32>
    %157 = vector.shape_cast %156 : vector<8xf32> to vector<8x1xf32>
    %cst_58 = arith.constant 7.812500e-03 : f32
    %158 = vector.broadcast %cst_58 : f32 to vector<8x1xf32>
    %159 = arith.mulf %157, %158 : vector<8x1xf32>
    %160 = vector.broadcast %159 : vector<8x1xf32> to vector<8x128xf32>
    %161 = arith.subf %153, %160 : vector<8x128xf32>
    %162 = arith.mulf %161, %161 : vector<8x128xf32>
    %cst_59 = arith.constant dense<0.000000e+00> : vector<8xf32>
    %163 = vector.multi_reduction <add>, %162, %cst_59 [1] : vector<8x128xf32> to vector<8xf32>
    %164 = vector.shape_cast %163 : vector<8xf32> to vector<8x1xf32>
    %cst_60 = arith.constant 0.00787401571 : f32
    %165 = vector.broadcast %cst_60 : f32 to vector<8x1xf32>
    %166 = arith.mulf %164, %165 : vector<8x1xf32>
    %167 = math.sqrt %166 : vector<8x1xf32>
    %cst_61 = arith.constant 9.99999997E-7 : f32
    %168 = vector.broadcast %cst_61 : f32 to vector<8x1xf32>
    %169 = arith.addf %167, %168 : vector<8x1xf32>
    %170 = tpu.reciprocal %169 {approx = true} : vector<8x1xf32> -> vector<8x1xf32>
    %171 = vector.broadcast %154 : vector<1x128xf32> to vector<8x128xf32>
    %172 = vector.broadcast %170 : vector<8x1xf32> to vector<8x128xf32>
    %173 = arith.mulf %171, %172 : vector<8x128xf32>
    %174 = arith.mulf %161, %173 : vector<8x128xf32>
    %175 = vector.broadcast %155 : vector<1x128xf32> to vector<8x128xf32>
    %176 = arith.addf %174, %175 : vector<8x128xf32>
    %177 = arith.truncf %176 : vector<8x128xf32> to vector<8x128xbf16>
    %c0_62 = arith.constant 0 : index
    %c0_63 = arith.constant 0 : index
    %178 = vector.load %arg9[%c0_62, %c0_63] : memref<128x256xbf16, #tpu.memory_space<vmem>>, vector<128x256xbf16>
    %cst_64 = arith.constant dense<0.000000e+00> : vector<8x256xf32>
    %179 = tpu.matmul %177, %178, %cst_64 {dimension_numbers = #tpu.dot_dimension_numbers<[1], [0], [0], [1], [0, 0, 1, 1], [], []>} : vector<8x128xbf16>, vector<128x256xbf16>, vector<8x256xf32> -> vector<8x256xf32>
    %c0_65 = arith.constant 0 : index
    %c0_66 = arith.constant 0 : index
    %180 = vector.load %arg10[%c0_65, %c0_66] : memref<1x256xf32, #tpu.memory_space<vmem>>, vector<1x256xf32>
    %181 = vector.broadcast %180 : vector<1x256xf32> to vector<8x256xf32>
    %182 = arith.addf %179, %181 : vector<8x256xf32>
    %cst_67 = arith.constant 0.000000e+00 : f32
    %183 = vector.broadcast %cst_67 : f32 to vector<8x256xf32>
    %184 = arith.maximumf %182, %183 : vector<8x256xf32>
    %185 = arith.truncf %184 : vector<8x256xf32> to vector<8x256xbf16>
    %c0_68 = arith.constant 0 : index
    %c0_69 = arith.constant 0 : index
    %186 = vector.load %arg11[%c0_68, %c0_69] : memref<256x128xbf16, #tpu.memory_space<vmem>>, vector<256x128xbf16>
    %cst_70 = arith.constant dense<0.000000e+00> : vector<8x128xf32>
    %187 = tpu.matmul %185, %186, %cst_70 {dimension_numbers = #tpu.dot_dimension_numbers<[1], [0], [0], [1], [0, 0, 1, 1], [], []>} : vector<8x256xbf16>, vector<256x128xbf16>, vector<8x128xf32> -> vector<8x128xf32>
    %c0_71 = arith.constant 0 : index
    %c0_72 = arith.constant 0 : index
    %188 = vector.load %arg12[%c0_71, %c0_72] : memref<1x128xf32, #tpu.memory_space<vmem>>, vector<1x128xf32>
    %189 = vector.broadcast %188 : vector<1x128xf32> to vector<8x128xf32>
    %190 = arith.addf %187, %189 : vector<8x128xf32>
    %191 = arith.addf %153, %190 : vector<8x128xf32>
    %c0_73 = arith.constant 0 : index
    %c0_74 = arith.constant 0 : index
    %c0_75 = arith.constant 0 : index
    %192 = vector.load %arg13[%c0_73, %c0_74, %c0_75] : memref<1x8x128xf32, #tpu.memory_space<vmem>>, vector<1x8x128xf32>
    %193 = vector.shape_cast %192 : vector<1x8x128xf32> to vector<8x128xf32>
    %194 = vector.shape_cast %191 : vector<8x128xf32> to vector<1x8x128xf32>
    tpu.vector_store %arg13[%c0_73, %c0_74, %c0_75], %194 {strides = array<i32>} : memref<1x8x128xf32, #tpu.memory_space<vmem>>, vector<1x8x128xf32>,
    return
  }
  func.func @transform_0(%arg0: i32) -> (i32, i32, i32) {
    %c0_i32 = arith.constant 0 : i32
    %c0_i32_0 = arith.constant 0 : i32
    %c0_i32_1 = arith.constant 0 : i32
    return %arg0, %c0_i32, %c0_i32_0 : i32, i32, i32
  }
  func.func @transform_1(%arg0: i32) -> (i32, i32, i32) {
    %c0_i32 = arith.constant 0 : i32
    %c0_i32_0 = arith.constant 0 : i32
    %c0_i32_1 = arith.constant 0 : i32
    return %arg0, %c0_i32, %c0_i32_0 : i32, i32, i32
  }
  func.func @transform_2(%arg0: i32) -> (i32, i32) {
    %c0_i32 = arith.constant 0 : i32
    %c0_i32_0 = arith.constant 0 : i32
    %c0_i32_1 = arith.constant 0 : i32
    return %c0_i32, %c0_i32_0 : i32, i32
  }
  func.func @transform_3(%arg0: i32) -> (i32, i32) {
    %c0_i32 = arith.constant 0 : i32
    %c0_i32_0 = arith.constant 0 : i32
    %c0_i32_1 = arith.constant 0 : i32
    return %c0_i32, %c0_i32_0 : i32, i32
  }
  func.func @transform_4(%arg0: i32) -> (i32, i32) {
    %c0_i32 = arith.constant 0 : i32
    %c0_i32_0 = arith.constant 0 : i32
    %c0_i32_1 = arith.constant 0 : i32
    return %c0_i32, %c0_i32_0 : i32, i32
  }
  func.func @transform_5(%arg0: i32) -> (i32, i32) {
    %c0_i32 = arith.constant 0 : i32
    %c0_i32_0 = arith.constant 0 : i32
    %c0_i32_1 = arith.constant 0 : i32
    return %c0_i32, %c0_i32_0 : i32, i32
  }
  func.func @transform_6(%arg0: i32) -> (i32, i32) {
    %c0_i32 = arith.constant 0 : i32
    %c0_i32_0 = arith.constant 0 : i32
    %c0_i32_1 = arith.constant 0 : i32
    return %c0_i32, %c0_i32_0 : i32, i32
  }
  func.func @transform_7(%arg0: i32) -> (i32, i32) {
    %c0_i32 = arith.constant 0 : i32
    %c0_i32_0 = arith.constant 0 : i32
    %c0_i32_1 = arith.constant 0 : i32
    return %c0_i32, %c0_i32_0 : i32, i32
  }
  func.func @transform_8(%arg0: i32) -> (i32, i32) {
    %c0_i32 = arith.constant 0 : i32
    %c0_i32_0 = arith.constant 0 : i32
    %c0_i32_1 = arith.constant 0 : i32
    return %c0_i32, %c0_i32_0 : i32, i32
  }
  func.func @transform_9(%arg0: i32) -> (i32, i32) {
    %c0_i32 = arith.constant 0 : i32
    %c0_i32_0 = arith.constant 0 : i32
    %c0_i32_1 = arith.constant 0 : i32
    return %c0_i32, %c0_i32_0 : i32, i32
  }
  func.func @transform_10(%arg0: i32) -> (i32, i32) {
    %c0_i32 = arith.constant 0 : i32
    %c0_i32_0 = arith.constant 0 : i32
    %c0_i32_1 = arith.constant 0 : i32
    return %c0_i32, %c0_i32_0 : i32, i32
  }
  func.func @transform_11(%arg0: i32) -> (i32, i32) {
    %c0_i32 = arith.constant 0 : i32
    %c0_i32_0 = arith.constant 0 : i32
    %c0_i32_1 = arith.constant 0 : i32
    return %c0_i32, %c0_i32_0 : i32, i32
  }
  func.func @transform_12(%arg0: i32) -> (i32, i32, i32) {
    %c0_i32 = arith.constant 0 : i32
    %c0_i32_0 = arith.constant 0 : i32
    %c0_i32_1 = arith.constant 0 : i32
    return %arg0, %c0_i32, %c0_i32_0 : i32, i32, i32
  }
}

</mosaic_0001>

<llo_original>
// kernel: tpu_custom_call.1
$region0: #{tpu_custom_call.1}
  #allocation0 [shape = 'u32[]', space=smem, size = 0x4, offset = 0x4, fixed_abs, tag = 'smem constant byte address 0x4 - core index']
  #allocation1 [shape = 'u32[72,128]{1,0:T(1,128)}', space=vmem, size = 0x9000, scoped, tag = 'internal scratch']
  %s0 = inlined_call_operand.hbm [shape: f32[2,8,128], index: 0, kind: input, shape index: {}]
  %s1 = inlined_call_operand.hbm [shape: f32[2,1,8], index: 1, kind: input, shape index: {}]
  %s2 = inlined_call_operand.vmem [shape: f32[1,128], index: 2, kind: input, shape index: {}]
  %s3 = inlined_call_operand.hbm [shape: f32[1,128], index: 3, kind: input, shape index: {}]
  %s4 = inlined_call_operand.hbm [shape: bf16[128,384], index: 4, kind: input, shape index: {}]
  %s5 = inlined_call_operand.hbm [shape: bf16[128,128], index: 5, kind: input, shape index: {}]
  %s6 = inlined_call_operand.vmem [shape: f32[1,128], index: 6, kind: input, shape index: {}]
  %s7 = inlined_call_operand.vmem [shape: f32[1,128], index: 7, kind: input, shape index: {}]
  %s8 = inlined_call_operand.hbm [shape: bf16[128,256], index: 8, kind: input, shape index: {}]
  %s9 = inlined_call_operand.vmem [shape: f32[1,256], index: 9, kind: input, shape index: {}]
  %s10 = inlined_call_operand.hbm [shape: bf16[256,128], index: 10, kind: input, shape index: {}]
  %s11 = inlined_call_operand.vmem [shape: f32[1,128], index: 11, kind: input, shape index: {}]
  %s12 = inlined_call_operand.hbm [shape: f32[2,8,128], index: 12, kind: output, shape index: {}]
  %s13 = sld [smem:[#allocation0]]
  $region109: #{tpu_custom_call.1} parent=0
    _
  %s15 = ssub.s32 1, %s13
  %s16 = scalar_select 0, %s15, %s13
  $region1: #{tpu_custom_call.1} parent=0
    #allocation2 [shape = 'u8[8192]{0}', space=vmem, size = 0x2000, scoped, tag = 'input window, operand 0']
    #allocation3 [shape = 's32[2]{0}', space=sflag, size = 0x8, scoped, tag = 'scoped memory for tpu_custom_call.1']
    #allocation4 [shape = 's32[2]{0}', space=sflag, size = 0x8, scoped, tag = 'scoped memory for tpu_custom_call.1']
    #allocation5 [shape = 'u8[1024]{0}', space=vmem, size = 0x400, scoped, tag = 'input window, operand 1']
    #allocation6 [shape = 's32[2]{0}', space=sflag, size = 0x8, scoped, tag = 'scoped memory for tpu_custom_call.1']
    #allocation7 [shape = 'u8[512]{0}', space=vmem, size = 0x400, scoped, tag = 'input window, operand 3, single buffered']
    #allocation8 [shape = 'u8[98304]{0}', space=vmem, size = 0x18000, scoped, tag = 'input window, operand 4, single buffered']
    #allocation9 [shape = 's32[1]{0}', space=sflag, size = 0x4, scoped, tag = 'scoped memory for tpu_custom_call.1']
    #allocation10 [shape = 'u8[32768]{0}', space=vmem, size = 0x8000, scoped, tag = 'input window, operand 5, single buffered']
    #allocation11 [shape = 'u8[65536]{0}', space=vmem, size = 0x10000, scoped, tag = 'input window, operand 8, single buffered']
    #allocation12 [shape = 's32[1]{0}', space=sflag, size = 0x4, scoped, tag = 'scoped memory for tpu_custom_call.1']
    #allocation13 [shape = 'u8[65536]{0}', space=vmem, size = 0x10000, scoped, tag = 'input window, operand 10, single buffered']
    #allocation14 [shape = 'u8[8192]{0}', space=vmem, size = 0x2000, scoped, tag = 'output window, operand 0']
    %17 = vsyncpa [#allocation3], 0
    %s18 = scalar_lea.sflag [#allocation3], 1
    %19 = vsyncpa %s18, 0
    %20 = vsyncpa [#allocation6], 0
    %s21 = scalar_lea.sflag [#allocation6], 1
    %22 = vsyncpa %s21, 0
    %23 = vsyncpa [#allocation9], 0
    %24 = vsyncpa [#allocation12], 0
    %25 = vsyncpa [#allocation4], 0
    %s26 = scalar_lea.sflag [#allocation4], 1
    %27 = vsyncpa %s26, 0
    loop: start=0, step=1, limit=4
    $region2: #{tpu_custom_call.1} parent=1 // loop_pre_header
      _
    $region3: #{tpu_custom_call.1} parent=1 // loop_header
      %s29 = sphi 0, %s33
      %p30 = scmp.ge.s32.totalorder %s29, 4
      %s39 = sphi 0, %s41
      %s42 = sphi 0, %s39
      %s43 = sphi 0, %s42
      %s59 = sphi 0, %s43
      %s65 = sphi 0, %s67
      %s68 = sphi 0, %s65
      %s69 = sphi 0, %s68
      %s85 = sphi 0, %s69
      %s89 = sphi 0, %s89
      %s91 = sphi 0, %s89
      %s92 = sphi 0, %s91
      %s106 = sphi 0, %s92
      %s110 = sphi 0, %s110
      %s112 = sphi 0, %s110
      %s113 = sphi 0, %s112
      %s127 = sphi 0, %s113
      %s131 = sphi 0, %s131
      %s133 = sphi 0, %s131
      %s134 = sphi 0, %s133
      %s148 = sphi 0, %s134
      %s152 = sphi 0, %s152
      %s154 = sphi 0, %s152
      %s155 = sphi 0, %s154
      %s169 = sphi 0, %s155
      %s173 = sphi 0, %s173
      %s175 = sphi 0, %s173
      %s176 = sphi 0, %s175
      %s190 = sphi 0, %s176
      %s194 = sphi 0, %s194
      %s196 = sphi 0, %s194
      %s197 = sphi 0, %s196
      %s211 = sphi 0, %s197
      %s215 = sphi 0, %s215
      %s217 = sphi 0, %s215
      %s218 = sphi 0, %s217
      %s232 = sphi 0, %s218
      %s236 = sphi 0, %s236
      %s238 = sphi 0, %s236
      %s239 = sphi 0, %s238
      %s253 = sphi 0, %s239
      %s257 = sphi 0, %s257
      %s259 = sphi 0, %s257
      %s260 = sphi 0, %s259
      %s274 = sphi 0, %s260
      %s278 = sphi 0, %s278
      %s280 = sphi 0, %s278
      %s281 = sphi 0, %s280
      %s295 = sphi 0, %s281
      %s301 = sphi 0, %s303
      %s304 = sphi 0, %s301
      %s305 = sphi 0, %s304
      %s321 = sphi 0, %s305
    $region4: #{tpu_custom_call.1} parent=1 // loop_header_branch
      %32 = sbr.rel (%p30) target = $region8
    $region5: #{tpu_custom_call.1} parent=1 // loop_body
      %s34 = ssub.s32 %s29, 1
      %s35 = ssub.s32 %s29, 2
      %s36 = sadd.s32 %s29, 1
      %s37 = ssub.s32 %s29, %s36
      %p38 = scmp.eq.s32.totalorder %s37, 0
      %s40 = sadd.s32 %s39, 1
      %s41 = scalar_select %p38, %s39, %s40
      %p44 = pneg %p38
      %p45 = scmp.eq.s32.totalorder %s29, 1
      %p46 = por %p44, %p45
      %p47 = scmp.ne.s32.totalorder %s39, %s42
      %p48 = scmp.eq.s32.totalorder %s29, 0
      %p49 = por %p47, %p48
      %p50 = scmp.ne.s32.totalorder %s39, %s42
      %p51 = scmp.eq.s32.totalorder %s34, 1
      %p52 = por %p50, %p51
      %p53 = scmp.ne.s32.totalorder %s42, %s43
      %p54 = scmp.eq.s32.totalorder %s34, 0
      %p55 = por %p53, %p54
      %p56 = scmp.ne.s32.totalorder %s42, %s43
      %p57 = scmp.eq.s32.totalorder %s35, 1
      %p58 = por %p56, %p57
      %p60 = scmp.ne.s32.totalorder %s43, %s59
      %p61 = scmp.eq.s32.totalorder %s35, 0
      %p62 = por %p60, %p61
      %s63 = ssub.s32 %s29, %s36
      %p64 = scmp.eq.s32.totalorder %s63, 0
      %s66 = sadd.s32 %s65, 1
      %s67 = scalar_select %p64, %s65, %s66
      %p70 = pneg %p64
      %p71 = scmp.eq.s32.totalorder %s29, 1
      %p72 = por %p70, %p71
      %p73 = scmp.ne.s32.totalorder %s65, %s68
      %p74 = scmp.eq.s32.totalorder %s29, 0
      %p75 = por %p73, %p74
      %p76 = scmp.ne.s32.totalorder %s65, %s68
      %p77 = scmp.eq.s32.totalorder %s34, 1
      %p78 = por %p76, %p77
      %p79 = scmp.ne.s32.totalorder %s68, %s69
      %p80 = scmp.eq.s32.totalorder %s34, 0
      %p81 = por %p79, %p80
      %p82 = scmp.ne.s32.totalorder %s68, %s69
      %p83 = scmp.eq.s32.totalorder %s35, 1
      %p84 = por %p82, %p83
      %p86 = scmp.ne.s32.totalorder %s69, %s85
      %p87 = scmp.eq.s32.totalorder %s35, 0
      %p88 = por %p86, %p87
      %s90 = sadd.s32 %s89, 1
      %p93 = scmp.eq.s32.totalorder %s29, 1
      %p94 = scmp.ne.s32.totalorder %s89, %s91
      %p95 = scmp.eq.s32.totalorder %s29, 0
      %p96 = por %p94, %p95
      %p97 = scmp.ne.s32.totalorder %s89, %s91
      %p98 = scmp.eq.s32.totalorder %s34, 1
      %p99 = por %p97, %p98
      %p100 = scmp.ne.s32.totalorder %s91, %s92
      %p101 = scmp.eq.s32.totalorder %s34, 0
      %p102 = por %p100, %p101
      %p103 = scmp.ne.s32.totalorder %s91, %s92
      %p104 = scmp.eq.s32.totalorder %s35, 1
      %p105 = por %p103, %p104
      %p107 = scmp.ne.s32.totalorder %s92, %s106
      %p108 = scmp.eq.s32.totalorder %s35, 0
      %p109 = por %p107, %p108
      %s111 = sadd.s32 %s110, 1
      %p114 = scmp.eq.s32.totalorder %s29, 1
      %p115 = scmp.ne.s32.totalorder %s110, %s112
      %p116 = scmp.eq.s32.totalorder %s29, 0
      %p117 = por %p115, %p116
      %p118 = scmp.ne.s32.totalorder %s110, %s112
      %p119 = scmp.eq.s32.totalorder %s34, 1
      %p120 = por %p118, %p119
      %p121 = scmp.ne.s32.totalorder %s112, %s113
      %p122 = scmp.eq.s32.totalorder %s34, 0
      %p123 = por %p121, %p122
      %p124 = scmp.ne.s32.totalorder %s112, %s113
      %p125 = scmp.eq.s32.totalorder %s35, 1
      %p126 = por %p124, %p125
      %p128 = scmp.ne.s32.totalorder %s113, %s127
      %p129 = scmp.eq.s32.totalorder %s35, 0
      %p130 = por %p128, %p129
      %s132 = sadd.s32 %s131, 1
      %p135 = scmp.eq.s32.totalorder %s29, 1
      %p136 = scmp.ne.s32.totalorder %s131, %s133
      %p137 = scmp.eq.s32.totalorder %s29, 0
      %p138 = por %p136, %p137
      %p139 = scmp.ne.s32.totalorder %s131, %s133
      %p140 = scmp.eq.s32.totalorder %s34, 1
      %p141 = por %p139, %p140
      %p142 = scmp.ne.s32.totalorder %s133, %s134
      %p143 = scmp.eq.s32.totalorder %s34, 0
      %p144 = por %p142, %p143
      %p145 = scmp.ne.s32.totalorder %s133, %s134
      %p146 = scmp.eq.s32.totalorder %s35, 1
      %p147 = por %p145, %p146
      %p149 = scmp.ne.s32.totalorder %s134, %s148
      %p150 = scmp.eq.s32.totalorder %s35, 0
      %p151 = por %p149, %p150
      %s153 = sadd.s32 %s152, 1
      %p156 = scmp.eq.s32.totalorder %s29, 1
      %p157 = scmp.ne.s32.totalorder %s152, %s154
      %p158 = scmp.eq.s32.totalorder %s29, 0
      %p159 = por %p157, %p158
      %p160 = scmp.ne.s32.totalorder %s152, %s154
      %p161 = scmp.eq.s32.totalorder %s34, 1
      %p162 = por %p160, %p161
      %p163 = scmp.ne.s32.totalorder %s154, %s155
      %p164 = scmp.eq.s32.totalorder %s34, 0
      %p165 = por %p163, %p164
      %p166 = scmp.ne.s32.totalorder %s154, %s155
      %p167 = scmp.eq.s32.totalorder %s35, 1
      %p168 = por %p166, %p167
      %p170 = scmp.ne.s32.totalorder %s155, %s169
      %p171 = scmp.eq.s32.totalorder %s35, 0
      %p172 = por %p170, %p171
      %s174 = sadd.s32 %s173, 1
      %p177 = scmp.eq.s32.totalorder %s29, 1
      %p178 = scmp.ne.s32.totalorder %s173, %s175
      %p179 = scmp.eq.s32.totalorder %s29, 0
      %p180 = por %p178, %p179
      %p181 = scmp.ne.s32.totalorder %s173, %s175
      %p182 = scmp.eq.s32.totalorder %s34, 1
      %p183 = por %p181, %p182
      %p184 = scmp.ne.s32.totalorder %s175, %s176
      %p185 = scmp.eq.s32.totalorder %s34, 0
      %p186 = por %p184, %p185
      %p187 = scmp.ne.s32.totalorder %s175, %s176
      %p188 = scmp.eq.s32.totalorder %s35, 1
      %p189 = por %p187, %p188
      %p191 = scmp.ne.s32.totalorder %s176, %s190
      %p192 = scmp.eq.s32.totalorder %s35, 0
      %p193 = por %p191, %p192
      %s195 = sadd.s32 %s194, 1
      %p198 = scmp.eq.s32.totalorder %s29, 1
      %p199 = scmp.ne.s32.totalorder %s194, %s196
      %p200 = scmp.eq.s32.totalorder %s29, 0
      %p201 = por %p199, %p200
      %p202 = scmp.ne.s32.totalorder %s194, %s196
      %p203 = scmp.eq.s32.totalorder %s34, 1
      %p204 = por %p202, %p203
      %p205 = scmp.ne.s32.totalorder %s196, %s197
      %p206 = scmp.eq.s32.totalorder %s34, 0
      %p207 = por %p205, %p206
      %p208 = scmp.ne.s32.totalorder %s196, %s197
      %p209 = scmp.eq.s32.totalorder %s35, 1
      %p210 = por %p208, %p209
      %p212 = scmp.ne.s32.totalorder %s197, %s211
      %p213 = scmp.eq.s32.totalorder %s35, 0
      %p214 = por %p212, %p213
      %s216 = sadd.s32 %s215, 1
      %p219 = scmp.eq.s32.totalorder %s29, 1
      %p220 = scmp.ne.s32.totalorder %s215, %s217
      %p221 = scmp.eq.s32.totalorder %s29, 0
      %p222 = por %p220, %p221
      %p223 = scmp.ne.s32.totalorder %s215, %s217
      %p224 = scmp.eq.s32.totalorder %s34, 1
      %p225 = por %p223, %p224
      %p226 = scmp.ne.s32.totalorder %s217, %s218
      %p227 = scmp.eq.s32.totalorder %s34, 0
      %p228 = por %p226, %p227
      %p229 = scmp.ne.s32.totalorder %s217, %s218
      %p230 = scmp.eq.s32.totalorder %s35, 1
      %p231 = por %p229, %p230
      %p233 = scmp.ne.s32.totalorder %s218, %s232
      %p234 = scmp.eq.s32.totalorder %s35, 0
      %p235 = por %p233, %p234
      %s237 = sadd.s32 %s236, 1
      %p240 = scmp.eq.s32.totalorder %s29, 1
      %p241 = scmp.ne.s32.totalorder %s236, %s238
      %p242 = scmp.eq.s32.totalorder %s29, 0
      %p243 = por %p241, %p242
      %p244 = scmp.ne.s32.totalorder %s236, %s238
      %p245 = scmp.eq.s32.totalorder %s34, 1
      %p246 = por %p244, %p245
      %p247 = scmp.ne.s32.totalorder %s238, %s239
      %p248 = scmp.eq.s32.totalorder %s34, 0
      %p249 = por %p247, %p248
      %p250 = scmp.ne.s32.totalorder %s238, %s239
      %p251 = scmp.eq.s32.totalorder %s35, 1
      %p252 = por %p250, %p251
      %p254 = scmp.ne.s32.totalorder %s239, %s253
      %p255 = scmp.eq.s32.totalorder %s35, 0
      %p256 = por %p254, %p255
      %s258 = sadd.s32 %s257, 1
      %p261 = scmp.eq.s32.totalorder %s29, 1
      %p262 = scmp.ne.s32.totalorder %s257, %s259
      %p263 = scmp.eq.s32.totalorder %s29, 0
      %p264 = por %p262, %p263
      %p265 = scmp.ne.s32.totalorder %s257, %s259
      %p266 = scmp.eq.s32.totalorder %s34, 1
      %p267 = por %p265, %p266
      %p268 = scmp.ne.s32.totalorder %s259, %s260
      %p269 = scmp.eq.s32.totalorder %s34, 0
      %p270 = por %p268, %p269
      %p271 = scmp.ne.s32.totalorder %s259, %s260
      %p272 = scmp.eq.s32.totalorder %s35, 1
      %p273 = por %p271, %p272
      %p275 = scmp.ne.s32.totalorder %s260, %s274
      %p276 = scmp.eq.s32.totalorder %s35, 0
      %p277 = por %p275, %p276
      %s279 = sadd.s32 %s278, 1
      %p282 = scmp.eq.s32.totalorder %s29, 1
      %p283 = scmp.ne.s32.totalorder %s278, %s280
      %p284 = scmp.eq.s32.totalorder %s29, 0
      %p285 = por %p283, %p284
      %p286 = scmp.ne.s32.totalorder %s278, %s280
      %p287 = scmp.eq.s32.totalorder %s34, 1
      %p288 = por %p286, %p287
      %p289 = scmp.ne.s32.totalorder %s280, %s281
      %p290 = scmp.eq.s32.totalorder %s34, 0
      %p291 = por %p289, %p290
      %p292 = scmp.ne.s32.totalorder %s280, %s281
      %p293 = scmp.eq.s32.totalorder %s35, 1
      %p294 = por %p292, %p293
      %p296 = scmp.ne.s32.totalorder %s281, %s295
      %p297 = scmp.eq.s32.totalorder %s35, 0
      %p298 = por %p296, %p297
      %s299 = ssub.s32 %s29, %s36
      %p300 = scmp.eq.s32.totalorder %s299, 0
      %s302 = sadd.s32 %s301, 1
      %s303 = scalar_select %p300, %s301, %s302
      %p306 = pneg %p300
      %p307 = scmp.eq.s32.totalorder %s29, 1
      %p308 = por %p306, %p307
      %p309 = scmp.ne.s32.totalorder %s301, %s304
      %p310 = scmp.eq.s32.totalorder %s29, 0
      %p311 = por %p309, %p310
      %p312 = scmp.ne.s32.totalorder %s301, %s304
      %p313 = scmp.eq.s32.totalorder %s34, 1
      %p314 = por %p312, %p313
      %p315 = scmp.ne.s32.totalorder %s304, %s305
      %p316 = scmp.eq.s32.totalorder %s34, 0
      %p317 = por %p315, %p316
      %p318 = scmp.ne.s32.totalorder %s304, %s305
      %p319 = scmp.eq.s32.totalorder %s35, 1
      %p320 = por %p318, %p319
      %p322 = scmp.ne.s32.totalorder %s305, %s321
      %p323 = scmp.eq.s32.totalorder %s35, 0
      %p324 = por %p322, %p323
      %p325 = scmp.le.s32.totalorder 1, %s29
      %p326 = scmp.lt.s32.totalorder %s29, 3
      %p327 = pnand %p325, %p326
      %p328 = pneg %p327
      // Predicated region
      $region9: #{tpu_custom_call.1} parent=5 // pred_check
        _
      $region10: #{tpu_custom_call.1} parent=5 // pred_check_branch
        %330 = sbr.rel (%p327) target = $region12
      $region11: #{tpu_custom_call.1} parent=5 // pred_region
        %s331 = ssub.s32 %s29, 1
        // Predicated region
        $region13: #{tpu_custom_call.1} parent=11 // pred_check
          %p332 = pneg %p102
        $region14: #{tpu_custom_call.1} parent=11 // pred_check_branch
          %334 = sbr.rel (%p332) target = $region16
        $region15: #{tpu_custom_call.1} parent=11 // pred_region
          _
        $region16: #{tpu_custom_call.1} parent=11 // pred_fallthru
          _
        // Predicated region
        $region17: #{tpu_custom_call.1} parent=11 // pred_check
          %p335 = pneg %p123
        $region18: #{tpu_custom_call.1} parent=11 // pred_check_branch
          %337 = sbr.rel (%p335) target = $region20
        $region19: #{tpu_custom_call.1} parent=11 // pred_region
          %339 = vsyncadd [#allocation6], 0
          %s341 = sshll.u32 %s3, 4
          %s342 = int_to_ptr.hbm [resolvable:$true] %s341
          %s343 = sshll.u32 [#allocation7], 4
          %s344 = int_to_ptr.vmem [resolvable:$true] %s343
          %346 = dma.hbm_to_vmem [thread:$0]  %s342, 16, %s344, [#allocation6]
        $region20: #{tpu_custom_call.1} parent=11 // pred_fallthru
          _
        // Predicated region
        $region21: #{tpu_custom_call.1} parent=11 // pred_check
          %p347 = pneg %p144
        $region22: #{tpu_custom_call.1} parent=11 // pred_check_branch
          %349 = sbr.rel (%p347) target = $region24
        $region23: #{tpu_custom_call.1} parent=11 // pred_region
          %351 = vsyncadd [#allocation9], 0
          %s352 = sshll.u32 %s4, 4
          %s353 = int_to_ptr.hbm [resolvable:$true] %s352
          %s354 = sshll.u32 [#allocation8], 4
          %s355 = int_to_ptr.vmem [resolvable:$true] %s354
          %360 = dma.hbm_to_vmem [thread:$0]  %s353, 3072, %s355, [#allocation9], 192, 192, 12
        $region24: #{tpu_custom_call.1} parent=11 // pred_fallthru
          _
        // Predicated region
        $region25: #{tpu_custom_call.1} parent=11 // pred_check
          %p361 = pneg %p165
        $region26: #{tpu_custom_call.1} parent=11 // pred_check_branch
          %363 = sbr.rel (%p361) target = $region28
        $region27: #{tpu_custom_call.1} parent=11 // pred_region
          %365 = vsyncadd [#allocation9], 0
          %s366 = sshll.u32 %s5, 4
          %s367 = int_to_ptr.hbm [resolvable:$true] %s366
          %s368 = sshll.u32 [#allocation10], 4
          %s369 = int_to_ptr.vmem [resolvable:$true] %s368
          %374 = dma.hbm_to_vmem [thread:$0]  %s367, 1024, %s369, [#allocation9], 64, 64, 4
        $region28: #{tpu_custom_call.1} parent=11 // pred_fallthru
          _
        // Predicated region
        $region29: #{tpu_custom_call.1} parent=11 // pred_check
          %p375 = pneg %p186
        $region30: #{tpu_custom_call.1} parent=11 // pred_check_branch
          %377 = sbr.rel (%p375) target = $region32
        $region31: #{tpu_custom_call.1} parent=11 // pred_region
          _
        $region32: #{tpu_custom_call.1} parent=11 // pred_fallthru
          _
        // Predicated region
        $region33: #{tpu_custom_call.1} parent=11 // pred_check
          %p378 = pneg %p207
        $region34: #{tpu_custom_call.1} parent=11 // pred_check_branch
          %380 = sbr.rel (%p378) target = $region36
        $region35: #{tpu_custom_call.1} parent=11 // pred_region
          _
        $region36: #{tpu_custom_call.1} parent=11 // pred_fallthru
          _
        // Predicated region
        $region37: #{tpu_custom_call.1} parent=11 // pred_check
          %p381 = pneg %p228
        $region38: #{tpu_custom_call.1} parent=11 // pred_check_branch
          %383 = sbr.rel (%p381) target = $region40
        $region39: #{tpu_custom_call.1} parent=11 // pred_region
          %385 = vsyncadd [#allocation12], 0
          %s386 = sshll.u32 %s8, 4
          %s387 = int_to_ptr.hbm [resolvable:$true] %s386
          %s388 = sshll.u32 [#allocation11], 4
          %s389 = int_to_ptr.vmem [resolvable:$true] %s388
          %394 = dma.hbm_to_vmem [thread:$0]  %s387, 2048, %s389, [#allocation12], 128, 128, 8
        $region40: #{tpu_custom_call.1} parent=11 // pred_fallthru
          _
        // Predicated region
        $region41: #{tpu_custom_call.1} parent=11 // pred_check
          %p395 = pneg %p249
        $region42: #{tpu_custom_call.1} parent=11 // pred_check_branch
          %397 = sbr.rel (%p395) target = $region44
        $region43: #{tpu_custom_call.1} parent=11 // pred_region
          _
        $region44: #{tpu_custom_call.1} parent=11 // pred_fallthru
          _
        // Predicated region
        $region45: #{tpu_custom_call.1} parent=11 // pred_check
          %p398 = pneg %p270
        $region46: #{tpu_custom_call.1} parent=11 // pred_check_branch
          %400 = sbr.rel (%p398) target = $region48
        $region47: #{tpu_custom_call.1} parent=11 // pred_region
          %402 = vsyncadd [#allocation12], 0
          %s403 = sshll.u32 %s10, 4
          %s404 = int_to_ptr.hbm [resolvable:$true] %s403
          %s405 = sshll.u32 [#allocation13], 4
          %s406 = int_to_ptr.vmem [resolvable:$true] %s405
          %411 = dma.hbm_to_vmem [thread:$0]  %s404, 2048, %s406, [#allocation12], 64, 64, 4
        $region48: #{tpu_custom_call.1} parent=11 // pred_fallthru
          _
        // Predicated region
        $region49: #{tpu_custom_call.1} parent=11 // pred_check
          %p412 = pneg %p291
        $region50: #{tpu_custom_call.1} parent=11 // pred_check_branch
          %414 = sbr.rel (%p412) target = $region52
        $region51: #{tpu_custom_call.1} parent=11 // pred_region
          _
        $region52: #{tpu_custom_call.1} parent=11 // pred_fallthru
          _
      $region12: #{tpu_custom_call.1} parent=5 // pred_fallthru
        _
      %p415 = scmp.lt.s32.totalorder %s29, 2
      // Predicated region
      $region53: #{tpu_custom_call.1} parent=5 // pred_check
        %p416 = pneg %p415
      $region54: #{tpu_custom_call.1} parent=5 // pred_check_branch
        %418 = sbr.rel (%p416) target = $region56
      $region55: #{tpu_custom_call.1} parent=5 // pred_region
        // Predicated region
        $region57: #{tpu_custom_call.1} parent=55 // pred_check
          %p419 = pneg %p49
        $region58: #{tpu_custom_call.1} parent=55 // pred_check_branch
          %421 = sbr.rel (%p419) target = $region60
        $region59: #{tpu_custom_call.1} parent=55 // pred_region
          %s422 = sand.u32 %s39, 1
          %s423 = scalar_lea.sflag [#allocation3], %s422
          %s424 = sand.u32 %s39, 1
          %s425 = smul.addr %s424, 8
          %s426 = scalar_lea.vmem [#allocation2], %s425
          %428 = vsyncadd %s423, 0
          %s429 = smul.addr %s29, 8
          %s430 = scalar_lea.hbm %s0, %s429
          %s432 = sshll.u32 %s430, 4
          %s433 = int_to_ptr.hbm [resolvable:$true] %s432
          %s434 = sshll.u32 %s426, 4
          %s435 = int_to_ptr.vmem [resolvable:$true] %s434
          %437 = dma.hbm_to_vmem [thread:$0]  %s433, 128, %s435, %s423
        $region60: #{tpu_custom_call.1} parent=55 // pred_fallthru
          _
        // Predicated region
        $region61: #{tpu_custom_call.1} parent=55 // pred_check
          %p438 = pneg %p75
        $region62: #{tpu_custom_call.1} parent=55 // pred_check_branch
          %440 = sbr.rel (%p438) target = $region64
        $region63: #{tpu_custom_call.1} parent=55 // pred_region
          %s441 = sand.u32 %s29, 1
          %s442 = scalar_lea.sflag [#allocation6], %s441
          %s443 = sand.u32 %s65, 1
          %s444 = scalar_lea.vmem [#allocation5], %s443
          %446 = vsyncadd %s442, 0
          %s447 = scalar_lea.hbm %s1, %s29
          %s449 = sshll.u32 %s447, 4
          %s450 = int_to_ptr.hbm [resolvable:$true] %s449
          %s451 = sshll.u32 %s444, 4
          %s452 = int_to_ptr.vmem [resolvable:$true] %s451
          %454 = dma.hbm_to_vmem [thread:$0]  %s450, 16, %s452, %s442
        $region64: #{tpu_custom_call.1} parent=55 // pred_fallthru
          _
      $region56: #{tpu_custom_call.1} parent=5 // pred_fallthru
        _
      %p455 = scmp.le.s32.totalorder 1, %s29
      %p456 = scmp.lt.s32.totalorder %s29, 3
      %p457 = pnand %p455, %p456
      %p458 = pneg %p457
      // Predicated region
      $region65: #{tpu_custom_call.1} parent=5 // pred_check
        _
      $region66: #{tpu_custom_call.1} parent=5 // pred_check_branch
        %460 = sbr.rel (%p457) target = $region68
      $region67: #{tpu_custom_call.1} parent=5 // pred_region
        %s461 = ssub.s32 %s29, 1
        %s462 = sand.u32 %s42, 1
        %s463 = scalar_lea.sflag [#allocation3], %s462
        %s464 = sand.u32 %s42, 1
        %s465 = smul.addr %s464, 8
        %s466 = scalar_lea.vmem [#allocation2], %s465
        // Predicated region
        $region69: #{tpu_custom_call.1} parent=67 // pred_check
          %p467 = pneg %p55
        $region70: #{tpu_custom_call.1} parent=67 // pred_check_branch
          %469 = sbr.rel (%p467) target = $region72
        $region71: #{tpu_custom_call.1} parent=67 // pred_region
          %471 = dma.done %s463, 128
        $region72: #{tpu_custom_call.1} parent=67 // pred_fallthru
          _
        %s472 = sand.u32 %s34, 1
        %s473 = scalar_lea.sflag [#allocation6], %s472
        %s474 = sand.u32 %s68, 1
        %s475 = scalar_lea.vmem [#allocation5], %s474
        // Predicated region
        $region73: #{tpu_custom_call.1} parent=67 // pred_check
          %p476 = pneg %p81
        $region74: #{tpu_custom_call.1} parent=67 // pred_check_branch
          %478 = sbr.rel (%p476) target = $region76
        $region75: #{tpu_custom_call.1} parent=67 // pred_region
          %480 = dma.done %s473, 16
        $region76: #{tpu_custom_call.1} parent=67 // pred_fallthru
          _
        // Predicated region
        $region77: #{tpu_custom_call.1} parent=67 // pred_check
          %p481 = pneg %p123
        $region78: #{tpu_custom_call.1} parent=67 // pred_check_branch
          %483 = sbr.rel (%p481) target = $region80
        $region79: #{tpu_custom_call.1} parent=67 // pred_region
          %485 = dma.done [#allocation6], 16
        $region80: #{tpu_custom_call.1} parent=67 // pred_fallthru
          _
        // Predicated region
        $region81: #{tpu_custom_call.1} parent=67 // pred_check
          %p486 = pneg %p144
        $region82: #{tpu_custom_call.1} parent=67 // pred_check_branch
          %488 = sbr.rel (%p486) target = $region84
        $region83: #{tpu_custom_call.1} parent=67 // pred_region
          %490 = dma.done [#allocation9], 3072
        $region84: #{tpu_custom_call.1} parent=67 // pred_fallthru
          _
        // Predicated region
        $region85: #{tpu_custom_call.1} parent=67 // pred_check
          %p491 = pneg %p165
        $region86: #{tpu_custom_call.1} parent=67 // pred_check_branch
          %493 = sbr.rel (%p491) target = $region88
        $region87: #{tpu_custom_call.1} parent=67 // pred_region
          %495 = dma.done [#allocation9], 1024
        $region88: #{tpu_custom_call.1} parent=67 // pred_fallthru
          _
        // Predicated region
        $region89: #{tpu_custom_call.1} parent=67 // pred_check
          %p496 = pneg %p228
        $region90: #{tpu_custom_call.1} parent=67 // pred_check_branch
          %498 = sbr.rel (%p496) target = $region92
        $region91: #{tpu_custom_call.1} parent=67 // pred_region
          %500 = dma.done [#allocation12], 2048
        $region92: #{tpu_custom_call.1} parent=67 // pred_fallthru
          _
        // Predicated region
        $region93: #{tpu_custom_call.1} parent=67 // pred_check
          %p501 = pneg %p270
        $region94: #{tpu_custom_call.1} parent=67 // pred_check_branch
          %503 = sbr.rel (%p501) target = $region96
        $region95: #{tpu_custom_call.1} parent=67 // pred_region
          %505 = dma.done [#allocation12], 2048
        $region96: #{tpu_custom_call.1} parent=67 // pred_fallthru
          _
        %s506 = sand.u32 %s42, 1
        %s507 = scalar_lea.sflag [#allocation3], %s506
        %s508 = sand.u32 %s42, 1
        %s509 = smul.addr %s508, 8
        %s510 = scalar_lea.vmem [#allocation2], %s509
        %p511 = pneg %p55
        %p512 = pneg %p52
        %s513 = sand.u32 %s34, 1
        %s514 = scalar_lea.sflag [#allocation6], %s513
        %s515 = sand.u32 %s68, 1
        %s516 = scalar_lea.vmem [#allocation5], %s515
        %p517 = pneg %p81
        %p518 = pneg %p78
        %p519 = pneg %p102
        %p520 = pneg %p99
        %p521 = pneg %p123
        %p522 = pneg %p120
        %p523 = pneg %p144
        %p524 = pneg %p141
        %p525 = pneg %p165
        %p526 = pneg %p162
        %p527 = pneg %p186
        %p528 = pneg %p183
        %p529 = pneg %p207
        %p530 = pneg %p204
        %p531 = pneg %p228
        %p532 = pneg %p225
        %p533 = pneg %p249
        %p534 = pneg %p246
        %p535 = pneg %p270
        %p536 = pneg %p267
        %p537 = pneg %p291
        %p538 = pneg %p288
        %p539 = pneg %p317
        %p540 = pneg %p314
        %s541 = sand.u32 %s304, 1
        %s542 = scalar_lea.sflag [#allocation4], %s541
        %s543 = sand.u32 %s304, 1
        %s544 = smul.addr %s543, 8
        %s545 = scalar_lea.vmem [#allocation14], %s544
        %v547 = vld [vmem:[%s466] sm:$0xff]
        %v548 = vld [vmem:[%s475] sm:$0x1]
        %v549 = vld [vmem:[%s2] sm:$0x1]
        %v550 = vld [vmem:[#allocation7] sm:$0x1]
        %551 = vadd.xlane.f32.xlu0 %v547
        %v552 = vpop.xlane.xlu0 %551
        %v553 = vmul.f32 %v552, 0.0078125
        %v554 = vsub.f32 %v547, %v553
        %v555 = vmul.f32 %v554, %v554
        %556 = vadd.xlane.f32.xlu0 %v555
        %v557 = vpop.xlane.xlu0 %556
        %v558 = vmul.f32 %v557, 0.007874016
        %v559 = vrsqrt.pop %v558
        %v560 = vmul.f32 %v559, %v558
        %v561 = vmul.f32 %v560, %v559
        %v562 = vmul.f32 0.5, %v561
        %v563 = vsub.f32 1.5, %v562
        %v564 = vmul.f32 %v559, %v563
        %v565 = vmul.f32 %v558, %v564
        %vm566 = vcmp.eq.f32.partialorder %v558, inf
        %v567 = vsel %vm566, %v558, %v565
        %vm568 = vcmp.eq.f32.partialorder %v558, 0.0
        %v569 = vand.u32 %v558, 2147483648
        %v570 = vsel %vm568, %v569, %v567
        %v571 = vadd.f32 %v570, 1e-06
        %v572 = vrcp.pop %v571
        %v574 = vperm.slane %v549, 0
        %v576 = vmul.f32 %v574, %v572
        %v577 = vmul.f32 %v554, %v576
        %v579 = vperm.slane %v550, 0
        %v581 = vadd.f32 %v577, %v579
        %v582 = vpack.c.bf16 %v581, %v581
        %v583 = vld [vmem:[#allocation8] sm:$0xff]
        %v584 = vld [vmem:[#allocation8 + $0x8] sm:$0xf]
        %v585 = vld [vmem:[#allocation8 + $0xc] sm:$0xff]
        %v586 = vld [vmem:[#allocation8 + $0x14] sm:$0xf]
        %v587 = vld [vmem:[#allocation8 + $0x18] sm:$0xff]
        %v588 = vld [vmem:[#allocation8 + $0x20] sm:$0xf]
        %v589 = vld [vmem:[#allocation8 + $0x24] sm:$0xff]
        %v590 = vld [vmem:[#allocation8 + $0x2c] sm:$0xf]
        %v591 = vld [vmem:[#allocation8 + $0x30] sm:$0xff]
        %v592 = vld [vmem:[#allocation8 + $0x38] sm:$0xf]
        %v593 = vld [vmem:[#allocation8 + $0x3c] sm:$0xff]
        %v594 = vld [vmem:[#allocation8 + $0x44] sm:$0xf]
        %v595 = vld [vmem:[#allocation8 + $0x48] sm:$0xff]
        %v596 = vld [vmem:[#allocation8 + $0x50] sm:$0xf]
        %v597 = vld [vmem:[#allocation8 + $0x54] sm:$0xff]
        %v598 = vld [vmem:[#allocation8 + $0x5c] sm:$0xf]
        %v599 = vld [vmem:[#allocation8 + $0x60] sm:$0xff]
        %v600 = vld [vmem:[#allocation8 + $0x68] sm:$0xf]
        %v601 = vld [vmem:[#allocation8 + $0x6c] sm:$0xff]
        %v602 = vld [vmem:[#allocation8 + $0x74] sm:$0xf]
        %v603 = vld [vmem:[#allocation8 + $0x78] sm:$0xff]
        %v604 = vld [vmem:[#allocation8 + $0x80] sm:$0xf]
        %v605 = vld [vmem:[#allocation8 + $0x84] sm:$0xff]
        %v606 = vld [vmem:[#allocation8 + $0x8c] sm:$0xf]
        %v607 = vld [vmem:[#allocation8 + $0x90] sm:$0xff]
        %v608 = vld [vmem:[#allocation8 + $0x98] sm:$0xf]
        %v609 = vld [vmem:[#allocation8 + $0x9c] sm:$0xff]
        %v610 = vld [vmem:[#allocation8 + $0xa4] sm:$0xf]
        %v611 = vld [vmem:[#allocation8 + $0xa8] sm:$0xff]
        %v612 = vld [vmem:[#allocation8 + $0xb0] sm:$0xf]
        %v613 = vld [vmem:[#allocation8 + $0xb4] sm:$0xff]
        %v614 = vld [vmem:[#allocation8 + $0xbc] sm:$0xf]
        %v647 = vunpack.c.l.b16 %v583
        %v648 = vunpack.c.h.b16 %v583
        %v649 = vunpack.c.l.b16 %v584
        %v650 = vunpack.c.l.b16 %v585
        %v651 = vunpack.c.h.b16 %v585
        %v652 = vunpack.c.l.b16 %v586
        %v653 = vunpack.c.l.b16 %v587
        %v654 = vunpack.c.h.b16 %v587
        %v655 = vunpack.c.l.b16 %v588
        %v656 = vunpack.c.l.b16 %v589
        %v657 = vunpack.c.h.b16 %v589
        %v658 = vunpack.c.l.b16 %v590
        %v659 = vunpack.c.l.b16 %v591
        %v660 = vunpack.c.h.b16 %v591
        %v661 = vunpack.c.l.b16 %v592
        %v662 = vunpack.c.l.b16 %v593
        %v663 = vunpack.c.h.b16 %v593
        %v664 = vunpack.c.l.b16 %v594
        %v665 = vunpack.c.l.b16 %v595
        %v666 = vunpack.c.h.b16 %v595
        %v667 = vunpack.c.l.b16 %v596
        %v668 = vunpack.c.l.b16 %v597
        %v669 = vunpack.c.h.b16 %v597
        %v670 = vunpack.c.l.b16 %v598
        %v671 = vunpack.c.l.b16 %v599
        %v672 = vunpack.c.h.b16 %v599
        %v673 = vunpack.c.l.b16 %v600
        %v674 = vunpack.c.l.b16 %v601
        %v675 = vunpack.c.h.b16 %v601
        %v676 = vunpack.c.l.b16 %v602
        %v677 = vunpack.c.l.b16 %v603
        %v678 = vunpack.c.h.b16 %v603
        %v679 = vunpack.c.l.b16 %v604
        %v680 = vunpack.c.l.b16 %v605
        %v681 = vunpack.c.h.b16 %v605
        %v682 = vunpack.c.l.b16 %v606
        %v683 = vunpack.c.l.b16 %v607
        %v684 = vunpack.c.h.b16 %v607
        %v685 = vunpack.c.l.b16 %v608
        %v686 = vunpack.c.l.b16 %v609
        %v687 = vunpack.c.h.b16 %v609
        %v688 = vunpack.c.l.b16 %v610
        %v689 = vunpack.c.l.b16 %v611
        %v690 = vunpack.c.h.b16 %v611
        %v691 = vunpack.c.l.b16 %v612
        %v692 = vunpack.c.l.b16 %v613
        %v693 = vunpack.c.h.b16 %v613
        %v694 = vunpack.c.l.b16 %v614
        %v695 = vpack.c.b16 %v650, %v647
        %v696 = vpack.c.b16 %v651, %v648
        %v697 = vpack.c.b16 %v652, %v649
        %v698 = vpack.c.b16 %v656, %v653
        %v699 = vpack.c.b16 %v657, %v654
        %v700 = vpack.c.b16 %v658, %v655
        %v701 = vpack.c.b16 %v662, %v659
        %v702 = vpack.c.b16 %v663, %v660
        %v703 = vpack.c.b16 %v664, %v661
        %v704 = vpack.c.b16 %v668, %v665
        %v705 = vpack.c.b16 %v669, %v666
        %v706 = vpack.c.b16 %v670, %v667
        %v707 = vpack.c.b16 %v674, %v671
        %v708 = vpack.c.b16 %v675, %v672
        %v709 = vpack.c.b16 %v676, %v673
        %v710 = vpack.c.b16 %v680, %v677
        %v711 = vpack.c.b16 %v681, %v678
        %v712 = vpack.c.b16 %v682, %v679
        %v713 = vpack.c.b16 %v686, %v683
        %v714 = vpack.c.b16 %v687, %v684
        %v715 = vpack.c.b16 %v688, %v685
        %v716 = vpack.c.b16 %v692, %v689
        %v717 = vpack.c.b16 %v693, %v690
        %v718 = vpack.c.b16 %v694, %v691
        %743 = vmatpush.bf16.msra.mxu0 %v716
        %744 = vmatpush.bf16.msra.mxu0 %v713
        %745 = vmatpush.bf16.msra.mxu0 %v710
        %746 = vmatpush.bf16.msra.mxu0 %v707
        %747 = vmatpush.bf16.msra.mxu0 %v704
        %748 = vmatpush.bf16.msra.mxu0 %v701
        %749 = vmatpush.bf16.msra.mxu0 %v698
        %750 = vmatpush.bf16.msra.mxu0 %v695
        %751 = vmatmul.bf16.gmra.mxu0 %v582
        %v752 = vpop.f32.mrf.mxu0
        %v753 = vadd.f32 0.0, %v752
        %v754 = vpop.f32.mrf.mxu0
        %755 = vdwg.mxu0
        %756 = vmatpush.bf16.msra.mxu0 %v717
        %757 = vmatpush.bf16.msra.mxu0 %v714
        %758 = vmatpush.bf16.msra.mxu0 %v711
        %759 = vmatpush.bf16.msra.mxu0 %v708
        %760 = vmatpush.bf16.msra.mxu0 %v705
        %761 = vmatpush.bf16.msra.mxu0 %v702
        %762 = vmatpush.bf16.msra.mxu0 %v699
        %763 = vmatpush.bf16.msra.mxu0 %v696
        %764 = vmatmul.bf16.gmra.mxu0 %v582
        %v765 = vpop.f32.mrf.mxu0
        %v766 = vadd.f32 0.0, %v765
        %v767 = vpop.f32.mrf.mxu0
        %768 = vdwg.mxu0
        %769 = vmatpush.bf16.msra.mxu0 %v718
        %770 = vmatpush.bf16.msra.mxu0 %v715
        %771 = vmatpush.bf16.msra.mxu0 %v712
        %772 = vmatpush.bf16.msra.mxu0 %v709
        %773 = vmatpush.bf16.msra.mxu0 %v706
        %774 = vmatpush.bf16.msra.mxu0 %v703
        %775 = vmatpush.bf16.msra.mxu0 %v700
        %776 = vmatpush.bf16.msra.mxu0 %v697
        %777 = vmatmul.bf16.gmra.mxu0 %v582
        %v778 = vpop.f32.mrf.mxu0
        %v779 = vadd.f32 0.0, %v778
        %v780 = vpop.f32.mrf.mxu0
        %781 = vdwg.mxu0
        %v782 = vpack.c.bf16 %v753, %v753
        %v783 = vpack.c.bf16 %v766, %v766
        %vm784 = vcmask 261120
        %v786 = vsel %vm784, %v782, 0
        %v789 = vsel %vm784, %v783, 0
        %791 = vmatpush.bf16.xpose.msra.mxu0 0
        %792 = vmatpush.bf16.xpose.msra.mxu0 0
        %793 = vmatpush.bf16.xpose.msra.mxu0 0
        %794 = vmatpush.bf16.xpose.msra.mxu0 0
        %795 = vmatpush.bf16.xpose.msra.mxu0 0
        %796 = vmatpush.bf16.xpose.msra.mxu0 0
        %797 = vmatpush.bf16.xpose.msra.mxu0 0
        %798 = vmatpush.bf16.xpose.msra.mxu0 %v789
        %799 = vmatmul.bf16.gmra.mxu0 %v786
        %v800 = vpop.f32.mrf.mxu0
        %v801 = vadd.f32 0.0, %v800
        %v802 = vpop.f32.mrf.mxu0
        %803 = vdwg.mxu0
        %v804 = vmul.f32 %v801, 0.17677669
        %vm805 = vcmp.eq.f32.partialorder %v548, 0.0
        %v806 = vsel %vm805, 1, 0
        %v807 = vperm.slane %v806, 0
        %vm808 = vcmp.eq.s32.totalorder %v807, 1
        %v809 = vsel %vm808, -1e+09, %v804
        %vm810 = vcmask 64512
        %v811 = vsel %vm810, %v809, -inf
        %812 = vmax.xlane.f32.xlu0 %v811
        %v813 = vpop.xlane.xlu0 %812
        %v814 = vsub.f32 %v809, %v813
        %v815 = vmul.f32 %v814, 1.442695
        %v816 = vpow.pop %v815
        %v817 = vsel %vm810, %v816, 0.0
        %818 = vadd.xlane.f32.xlu0 %v817
        %v819 = vpop.xlane.xlu0 %818
        %v820 = vrcp.pop %v819
        %v821 = vmul.f32 %v816, %v820
        %v822 = vpack.c.bf16 %v821, %v821
        %v823 = vpack.c.bf16 %v779, %v779
        %v825 = vsel %vm810, %v822, 0
        %vm827 = vcmask 1043456
        %v829 = vsel %vm827, %v823, 0
        %831 = vmatpush.bf16.msra.mxu0 0
        %832 = vmatpush.bf16.msra.mxu0 0
        %833 = vmatpush.bf16.msra.mxu0 0
        %834 = vmatpush.bf16.msra.mxu0 0
        %835 = vmatpush.bf16.msra.mxu0 0
        %836 = vmatpush.bf16.msra.mxu0 0
        %837 = vmatpush.bf16.msra.mxu0 0
        %838 = vmatpush.bf16.msra.mxu0 %v829
        %839 = vmatmul.bf16.gmra.mxu0 %v825
        %v840 = vpop.f32.mrf.mxu0
        %v841 = vadd.f32 0.0, %v840
        %v842 = vpop.f32.mrf.mxu0
        %843 = vdwg.mxu0
        %v844 = vpack.c.bf16 %v841, %v841
        %v845 = vld [vmem:[#allocation10] sm:$0xf]
        %v846 = vld [vmem:[#allocation10 + $0x4] sm:$0xf]
        %v847 = vld [vmem:[#allocation10 + $0x8] sm:$0xf]
        %v848 = vld [vmem:[#allocation10 + $0xc] sm:$0xf]
        %v853 = vunpack.c.l.b16 %v845
        %v854 = vunpack.c.l.b16 %v846
        %v855 = vunpack.c.l.b16 %v847
        %v856 = vunpack.c.l.b16 %v848
        %v857 = vpack.c.b16 %v854, %v853
        %v858 = vpack.c.b16 %v856, %v855
        %v862 = vsel %vm784, %v844, 0
        %864 = vmatpush.bf16.msra.mxu0 0
        %865 = vmatpush.bf16.msra.mxu0 0
        %866 = vmatpush.bf16.msra.mxu0 0
        %867 = vmatpush.bf16.msra.mxu0 0
        %868 = vmatpush.bf16.msra.mxu0 0
        %869 = vmatpush.bf16.msra.mxu0 0
        %870 = vmatpush.bf16.msra.mxu0 %v858
        %871 = vmatpush.bf16.msra.mxu0 %v857
        %872 = vmatmul.bf16.gmra.mxu0 %v862
        %v873 = vpop.f32.mrf.mxu0
        %v874 = vadd.f32 0.0, %v873
        %v875 = vpop.f32.mrf.mxu0
        %876 = vdwg.mxu0
        %v877 = vadd.f32 %v547, %v874
        %879 = vrot.lane.b32.xlu0 %v782, 96
        %v880 = vpop.permute.xlu0 %879
        %882 = vrot.lane.b32.xlu0 %v783, 96
        %v883 = vpop.permute.xlu0 %882
        %v885 = vsel %vm784, %v880, 0
        %v888 = vsel %vm784, %v883, 0
        %890 = vmatpush.bf16.xpose.msra.mxu0 0
        %891 = vmatpush.bf16.xpose.msra.mxu0 0
        %892 = vmatpush.bf16.xpose.msra.mxu0 0
        %893 = vmatpush.bf16.xpose.msra.mxu0 0
        %894 = vmatpush.bf16.xpose.msra.mxu0 0
        %895 = vmatpush.bf16.xpose.msra.mxu0 0
        %896 = vmatpush.bf16.xpose.msra.mxu0 0
        %897 = vmatpush.bf16.xpose.msra.mxu0 %v888
        %898 = vmatmul.bf16.gmra.mxu0 %v885
        %v899 = vpop.f32.mrf.mxu0
        %v900 = vadd.f32 0.0, %v899
        %v901 = vpop.f32.mrf.mxu0
        %902 = vdwg.mxu0
        %v903 = vmul.f32 %v900, 0.17677669
        %v904 = vsel %vm808, -1e+09, %v903
        %v905 = vsel %vm810, %v904, -inf
        %906 = vmax.xlane.f32.xlu0 %v905
        %v907 = vpop.xlane.xlu0 %906
        %v908 = vsub.f32 %v904, %v907
        %v909 = vmul.f32 %v908, 1.442695
        %v910 = vpow.pop %v909
        %v911 = vsel %vm810, %v910, 0.0
        %912 = vadd.xlane.f32.xlu0 %v911
        %v913 = vpop.xlane.xlu0 %912
        %v914 = vrcp.pop %v913
        %v915 = vmul.f32 %v910, %v914
        %v916 = vpack.c.bf16 %v915, %v915
        %918 = vrot.lane.b32.xlu0 %v823, 96
        %v919 = vpop.permute.xlu0 %918
        %v921 = vsel %vm810, %v916, 0
        %v924 = vsel %vm827, %v919, 0
        %926 = vmatpush.bf16.msra.mxu0 0
        %927 = vmatpush.bf16.msra.mxu0 0
        %928 = vmatpush.bf16.msra.mxu0 0
        %929 = vmatpush.bf16.msra.mxu0 0
        %930 = vmatpush.bf16.msra.mxu0 0
        %931 = vmatpush.bf16.msra.mxu0 0
        %932 = vmatpush.bf16.msra.mxu0 0
        %933 = vmatpush.bf16.msra.mxu0 %v924
        %934 = vmatmul.bf16.gmra.mxu0 %v921
        %v935 = vpop.f32.mrf.mxu0
        %v936 = vadd.f32 0.0, %v935
        %v937 = vpop.f32.mrf.mxu0
        %938 = vdwg.mxu0
        %v939 = vpack.c.bf16 %v936, %v936
        %v940 = vld [vmem:[#allocation10 + $0x10] sm:$0xf]
        %v941 = vld [vmem:[#allocation10 + $0x14] sm:$0xf]
        %v942 = vld [vmem:[#allocation10 + $0x18] sm:$0xf]
        %v943 = vld [vmem:[#allocation10 + $0x1c] sm:$0xf]
        %v948 = vunpack.c.l.b16 %v940
        %v949 = vunpack.c.l.b16 %v941
        %v950 = vunpack.c.l.b16 %v942
        %v951 = vunpack.c.l.b16 %v943
        %v952 = vpack.c.b16 %v949, %v948
        %v953 = vpack.c.b16 %v951, %v950
        %v957 = vsel %vm784, %v939, 0
        %959 = vmatpush.bf16.msra.mxu0 0
        %960 = vmatpush.bf16.msra.mxu0 0
        %961 = vmatpush.bf16.msra.mxu0 0
        %962 = vmatpush.bf16.msra.mxu0 0
        %963 = vmatpush.bf16.msra.mxu0 0
        %964 = vmatpush.bf16.msra.mxu0 0
        %965 = vmatpush.bf16.msra.mxu0 %v953
        %966 = vmatpush.bf16.msra.mxu0 %v952
        %967 = vmatmul.bf16.gmra.mxu0 %v957
        %v968 = vpop.f32.mrf.mxu0
        %v969 = vadd.f32 0.0, %v968
        %v970 = vpop.f32.mrf.mxu0
        %971 = vdwg.mxu0
        %v972 = vadd.f32 %v877, %v969
        %973 = vrot.lane.b32.xlu0 %v782, 64
        %v974 = vpop.permute.xlu0 %973
        %975 = vrot.lane.b32.xlu0 %v783, 64
        %v976 = vpop.permute.xlu0 %975
        %v978 = vsel %vm784, %v974, 0
        %v981 = vsel %vm784, %v976, 0
        %983 = vmatpush.bf16.xpose.msra.mxu0 0
        %984 = vmatpush.bf16.xpose.msra.mxu0 0
        %985 = vmatpush.bf16.xpose.msra.mxu0 0
        %986 = vmatpush.bf16.xpose.msra.mxu0 0
        %987 = vmatpush.bf16.xpose.msra.mxu0 0
        %988 = vmatpush.bf16.xpose.msra.mxu0 0
        %989 = vmatpush.bf16.xpose.msra.mxu0 0
        %990 = vmatpush.bf16.xpose.msra.mxu0 %v981
        %991 = vmatmul.bf16.gmra.mxu0 %v978
        %v992 = vpop.f32.mrf.mxu0
        %v993 = vadd.f32 0.0, %v992
        %v994 = vpop.f32.mrf.mxu0
        %995 = vdwg.mxu0
        %v996 = vmul.f32 %v993, 0.17677669
        %v997 = vsel %vm808, -1e+09, %v996
        %v998 = vsel %vm810, %v997, -inf
        %999 = vmax.xlane.f32.xlu0 %v998
        %v1000 = vpop.xlane.xlu0 %999
        %v1001 = vsub.f32 %v997, %v1000
        %v1002 = vmul.f32 %v1001, 1.442695
        %v1003 = vpow.pop %v1002
        %v1004 = vsel %vm810, %v1003, 0.0
        %1005 = vadd.xlane.f32.xlu0 %v1004
        %v1006 = vpop.xlane.xlu0 %1005
        %v1007 = vrcp.pop %v1006
        %v1008 = vmul.f32 %v1003, %v1007
        %v1009 = vpack.c.bf16 %v1008, %v1008
        %1010 = vrot.lane.b32.xlu0 %v823, 64
        %v1011 = vpop.permute.xlu0 %1010
        %v1013 = vsel %vm810, %v1009, 0
        %v1016 = vsel %vm827, %v1011, 0
        %1018 = vmatpush.bf16.msra.mxu0 0
        %1019 = vmatpush.bf16.msra.mxu0 0
        %1020 = vmatpush.bf16.msra.mxu0 0
        %1021 = vmatpush.bf16.msra.mxu0 0
        %1022 = vmatpush.bf16.msra.mxu0 0
        %1023 = vmatpush.bf16.msra.mxu0 0
        %1024 = vmatpush.bf16.msra.mxu0 0
        %1025 = vmatpush.bf16.msra.mxu0 %v1016
        %1026 = vmatmul.bf16.gmra.mxu0 %v1013
        %v1027 = vpop.f32.mrf.mxu0
        %v1028 = vadd.f32 0.0, %v1027
        %v1029 = vpop.f32.mrf.mxu0
        %1030 = vdwg.mxu0
        %v1031 = vpack.c.bf16 %v1028, %v1028
        %v1032 = vld [vmem:[#allocation10 + $0x20] sm:$0xf]
        %v1033 = vld [vmem:[#allocation10 + $0x24] sm:$0xf]
        %v1034 = vld [vmem:[#allocation10 + $0x28] sm:$0xf]
        %v1035 = vld [vmem:[#allocation10 + $0x2c] sm:$0xf]
        %v1040 = vunpack.c.l.b16 %v1032
        %v1041 = vunpack.c.l.b16 %v1033
        %v1042 = vunpack.c.l.b16 %v1034
        %v1043 = vunpack.c.l.b16 %v1035
        %v1044 = vpack.c.b16 %v1041, %v1040
        %v1045 = vpack.c.b16 %v1043, %v1042
        %v1049 = vsel %vm784, %v1031, 0
        %1051 = vmatpush.bf16.msra.mxu0 0
        %1052 = vmatpush.bf16.msra.mxu0 0
        %1053 = vmatpush.bf16.msra.mxu0 0
        %1054 = vmatpush.bf16.msra.mxu0 0
        %1055 = vmatpush.bf16.msra.mxu0 0
        %1056 = vmatpush.bf16.msra.mxu0 0
        %1057 = vmatpush.bf16.msra.mxu0 %v1045
        %1058 = vmatpush.bf16.msra.mxu0 %v1044
        %1059 = vmatmul.bf16.gmra.mxu0 %v1049
        %v1060 = vpop.f32.mrf.mxu0
        %v1061 = vadd.f32 0.0, %v1060
        %v1062 = vpop.f32.mrf.mxu0
        %1063 = vdwg.mxu0
        %v1064 = vadd.f32 %v972, %v1061
        %1065 = vrot.lane.b32.xlu0 %v782, 32
        %v1066 = vpop.permute.xlu0 %1065
        %1067 = vrot.lane.b32.xlu0 %v783, 32
        %v1068 = vpop.permute.xlu0 %1067
        %v1070 = vsel %vm784, %v1066, 0
        %v1073 = vsel %vm784, %v1068, 0
        %1075 = vmatpush.bf16.xpose.msra.mxu0 0
        %1076 = vmatpush.bf16.xpose.msra.mxu0 0
        %1077 = vmatpush.bf16.xpose.msra.mxu0 0
        %1078 = vmatpush.bf16.xpose.msra.mxu0 0
        %1079 = vmatpush.bf16.xpose.msra.mxu0 0
        %1080 = vmatpush.bf16.xpose.msra.mxu0 0
        %1081 = vmatpush.bf16.xpose.msra.mxu0 0
        %1082 = vmatpush.bf16.xpose.msra.mxu0 %v1073
        %1083 = vmatmul.bf16.gmra.mxu0 %v1070
        %v1084 = vpop.f32.mrf.mxu0
        %v1085 = vadd.f32 0.0, %v1084
        %v1086 = vpop.f32.mrf.mxu0
        %1087 = vdwg.mxu0
        %v1088 = vmul.f32 %v1085, 0.17677669
        %v1089 = vsel %vm808, -1e+09, %v1088
        %v1090 = vsel %vm810, %v1089, -inf
        %1091 = vmax.xlane.f32.xlu0 %v1090
        %v1092 = vpop.xlane.xlu0 %1091
        %v1093 = vsub.f32 %v1089, %v1092
        %v1094 = vmul.f32 %v1093, 1.442695
        %v1095 = vpow.pop %v1094
        %v1096 = vsel %vm810, %v1095, 0.0
        %1097 = vadd.xlane.f32.xlu0 %v1096
        %v1098 = vpop.xlane.xlu0 %1097
        %v1099 = vrcp.pop %v1098
        %v1100 = vmul.f32 %v1095, %v1099
        %v1101 = vpack.c.bf16 %v1100, %v1100
        %1102 = vrot.lane.b32.xlu0 %v823, 32
        %v1103 = vpop.permute.xlu0 %1102
        %v1105 = vsel %vm810, %v1101, 0
        %v1108 = vsel %vm827, %v1103, 0
        %1110 = vmatpush.bf16.msra.mxu0 0
        %1111 = vmatpush.bf16.msra.mxu0 0
        %1112 = vmatpush.bf16.msra.mxu0 0
        %1113 = vmatpush.bf16.msra.mxu0 0
        %1114 = vmatpush.bf16.msra.mxu0 0
        %1115 = vmatpush.bf16.msra.mxu0 0
        %1116 = vmatpush.bf16.msra.mxu0 0
        %1117 = vmatpush.bf16.msra.mxu0 %v1108
        %1118 = vmatmul.bf16.gmra.mxu0 %v1105
        %v1119 = vpop.f32.mrf.mxu0
        %v1120 = vadd.f32 0.0, %v1119
        %v1121 = vpop.f32.mrf.mxu0
        %1122 = vdwg.mxu0
        %v1123 = vpack.c.bf16 %v1120, %v1120
        %v1124 = vld [vmem:[#allocation10 + $0x30] sm:$0xf]
        %v1125 = vld [vmem:[#allocation10 + $0x34] sm:$0xf]
        %v1126 = vld [vmem:[#allocation10 + $0x38] sm:$0xf]
        %v1127 = vld [vmem:[#allocation10 + $0x3c] sm:$0xf]
        %v1132 = vunpack.c.l.b16 %v1124
        %v1133 = vunpack.c.l.b16 %v1125
        %v1134 = vunpack.c.l.b16 %v1126
        %v1135 = vunpack.c.l.b16 %v1127
        %v1136 = vpack.c.b16 %v1133, %v1132
        %v1137 = vpack.c.b16 %v1135, %v1134
        %v1141 = vsel %vm784, %v1123, 0
        %1143 = vmatpush.bf16.msra.mxu0 0
        %1144 = vmatpush.bf16.msra.mxu0 0
        %1145 = vmatpush.bf16.msra.mxu0 0
        %1146 = vmatpush.bf16.msra.mxu0 0
        %1147 = vmatpush.bf16.msra.mxu0 0
        %1148 = vmatpush.bf16.msra.mxu0 0
        %1149 = vmatpush.bf16.msra.mxu0 %v1137
        %1150 = vmatpush.bf16.msra.mxu0 %v1136
        %1151 = vmatmul.bf16.gmra.mxu0 %v1141
        %v1152 = vpop.f32.mrf.mxu0
        %v1153 = vadd.f32 0.0, %v1152
        %v1154 = vpop.f32.mrf.mxu0
        %1155 = vdwg.mxu0
        %v1156 = vadd.f32 %v1064, %v1153
        %v1157 = vld [vmem:[%s6] sm:$0x1]
        %v1158 = vld [vmem:[%s7] sm:$0x1]
        %1159 = vadd.xlane.f32.xlu0 %v1156
        %v1160 = vpop.xlane.xlu0 %1159
        %v1161 = vmul.f32 %v1160, 0.0078125
        %v1162 = vsub.f32 %v1156, %v1161
        %v1163 = vmul.f32 %v1162, %v1162
        %1164 = vadd.xlane.f32.xlu0 %v1163
        %v1165 = vpop.xlane.xlu0 %1164
        %v1166 = vmul.f32 %v1165, 0.007874016
        %v1167 = vrsqrt.pop %v1166
        %v1168 = vmul.f32 %v1167, %v1166
        %v1169 = vmul.f32 %v1168, %v1167
        %v1170 = vmul.f32 0.5, %v1169
        %v1171 = vsub.f32 1.5, %v1170
        %v1172 = vmul.f32 %v1167, %v1171
        %v1173 = vmul.f32 %v1166, %v1172
        %vm1174 = vcmp.eq.f32.partialorder %v1166, inf
        %v1175 = vsel %vm1174, %v1166, %v1173
        %vm1176 = vcmp.eq.f32.partialorder %v1166, 0.0
        %v1177 = vand.u32 %v1166, 2147483648
        %v1178 = vsel %vm1176, %v1177, %v1175
        %v1179 = vadd.f32 %v1178, 1e-06
        %v1180 = vrcp.pop %v1179
        %v1182 = vperm.slane %v1157, 0
        %v1184 = vmul.f32 %v1182, %v1180
        %v1185 = vmul.f32 %v1162, %v1184
        %v1187 = vperm.slane %v1158, 0
        %v1189 = vadd.f32 %v1185, %v1187
        %v1190 = vpack.c.bf16 %v1189, %v1189
        %v1191 = vld [vmem:[#allocation11] sm:$0xff]
        %v1192 = vld [vmem:[#allocation11 + $0x8] sm:$0xff]
        %v1193 = vld [vmem:[#allocation11 + $0x10] sm:$0xff]
        %v1194 = vld [vmem:[#allocation11 + $0x18] sm:$0xff]
        %v1195 = vld [vmem:[#allocation11 + $0x20] sm:$0xff]
        %v1196 = vld [vmem:[#allocation11 + $0x28] sm:$0xff]
        %v1197 = vld [vmem:[#allocation11 + $0x30] sm:$0xff]
        %v1198 = vld [vmem:[#allocation11 + $0x38] sm:$0xff]
        %v1199 = vld [vmem:[#allocation11 + $0x40] sm:$0xff]
        %v1200 = vld [vmem:[#allocation11 + $0x48] sm:$0xff]
        %v1201 = vld [vmem:[#allocation11 + $0x50] sm:$0xff]
        %v1202 = vld [vmem:[#allocation11 + $0x58] sm:$0xff]
        %v1203 = vld [vmem:[#allocation11 + $0x60] sm:$0xff]
        %v1204 = vld [vmem:[#allocation11 + $0x68] sm:$0xff]
        %v1205 = vld [vmem:[#allocation11 + $0x70] sm:$0xff]
        %v1206 = vld [vmem:[#allocation11 + $0x78] sm:$0xff]
        %v1207 = vld [vmem:[%s9] sm:$0x3]
        %v1209 = vperm.slane %v1207, 0
        %v1210 = vperm.slane %v1207, 1
        %v1229 = vunpack.c.l.b16 %v1191
        %v1230 = vunpack.c.h.b16 %v1191
        %v1231 = vunpack.c.l.b16 %v1192
        %v1232 = vunpack.c.h.b16 %v1192
        %v1233 = vunpack.c.l.b16 %v1193
        %v1234 = vunpack.c.h.b16 %v1193
        %v1235 = vunpack.c.l.b16 %v1194
        %v1236 = vunpack.c.h.b16 %v1194
        %v1237 = vunpack.c.l.b16 %v1195
        %v1238 = vunpack.c.h.b16 %v1195
        %v1239 = vunpack.c.l.b16 %v1196
        %v1240 = vunpack.c.h.b16 %v1196
        %v1241 = vunpack.c.l.b16 %v1197
        %v1242 = vunpack.c.h.b16 %v1197
        %v1243 = vunpack.c.l.b16 %v1198
        %v1244 = vunpack.c.h.b16 %v1198
        %v1245 = vunpack.c.l.b16 %v1199
        %v1246 = vunpack.c.h.b16 %v1199
        %v1247 = vunpack.c.l.b16 %v1200
        %v1248 = vunpack.c.h.b16 %v1200
        %v1249 = vunpack.c.l.b16 %v1201
        %v1250 = vunpack.c.h.b16 %v1201
        %v1251 = vunpack.c.l.b16 %v1202
        %v1252 = vunpack.c.h.b16 %v1202
        %v1253 = vunpack.c.l.b16 %v1203
        %v1254 = vunpack.c.h.b16 %v1203
        %v1255 = vunpack.c.l.b16 %v1204
        %v1256 = vunpack.c.h.b16 %v1204
        %v1257 = vunpack.c.l.b16 %v1205
        %v1258 = vunpack.c.h.b16 %v1205
        %v1259 = vunpack.c.l.b16 %v1206
        %v1260 = vunpack.c.h.b16 %v1206
        %v1261 = vpack.c.b16 %v1231, %v1229
        %v1262 = vpack.c.b16 %v1232, %v1230
        %v1263 = vpack.c.b16 %v1235, %v1233
        %v1264 = vpack.c.b16 %v1236, %v1234
        %v1265 = vpack.c.b16 %v1239, %v1237
        %v1266 = vpack.c.b16 %v1240, %v1238
        %v1267 = vpack.c.b16 %v1243, %v1241
        %v1268 = vpack.c.b16 %v1244, %v1242
        %v1269 = vpack.c.b16 %v1247, %v1245
        %v1270 = vpack.c.b16 %v1248, %v1246
        %v1271 = vpack.c.b16 %v1251, %v1249
        %v1272 = vpack.c.b16 %v1252, %v1250
        %v1273 = vpack.c.b16 %v1255, %v1253
        %v1274 = vpack.c.b16 %v1256, %v1254
        %v1275 = vpack.c.b16 %v1259, %v1257
        %v1276 = vpack.c.b16 %v1260, %v1258
        %1293 = vmatpush.bf16.msra.mxu0 %v1275
        %1294 = vmatpush.bf16.msra.mxu0 %v1273
        %1295 = vmatpush.bf16.msra.mxu0 %v1271
        %1296 = vmatpush.bf16.msra.mxu0 %v1269
        %1297 = vmatpush.bf16.msra.mxu0 %v1267
        %1298 = vmatpush.bf16.msra.mxu0 %v1265
        %1299 = vmatpush.bf16.msra.mxu0 %v1263
        %1300 = vmatpush.bf16.msra.mxu0 %v1261
        %1301 = vmatmul.bf16.gmra.mxu0 %v1190
        %v1302 = vpop.f32.mrf.mxu0
        %v1303 = vadd.f32 %v1209, %v1302
        %v1304 = vpop.f32.mrf.mxu0
        %1305 = vdwg.mxu0
        %1306 = vmatpush.bf16.msra.mxu0 %v1276
        %1307 = vmatpush.bf16.msra.mxu0 %v1274
        %1308 = vmatpush.bf16.msra.mxu0 %v1272
        %1309 = vmatpush.bf16.msra.mxu0 %v1270
        %1310 = vmatpush.bf16.msra.mxu0 %v1268
        %1311 = vmatpush.bf16.msra.mxu0 %v1266
        %1312 = vmatpush.bf16.msra.mxu0 %v1264
        %1313 = vmatpush.bf16.msra.mxu0 %v1262
        %1314 = vmatmul.bf16.gmra.mxu0 %v1190
        %v1315 = vpop.f32.mrf.mxu0
        %v1316 = vadd.f32 %v1210, %v1315
        %v1317 = vpop.f32.mrf.mxu0
        %1318 = vdwg.mxu0
        %v1319 = vmax.f32 %v1303, 0.0
        %v1320 = vmax.f32 %v1316, 0.0
        %v1321 = vpack.c.bf16 %v1319, %v1319
        %v1322 = vpack.c.bf16 %v1320, %v1320
        %v1323 = vld [vmem:[#allocation13] sm:$0xf]
        %v1324 = vld [vmem:[#allocation13 + $0x4] sm:$0xf]
        %v1325 = vld [vmem:[#allocation13 + $0x8] sm:$0xf]
        %v1326 = vld [vmem:[#allocation13 + $0xc] sm:$0xf]
        %v1327 = vld [vmem:[#allocation13 + $0x10] sm:$0xf]
        %v1328 = vld [vmem:[#allocation13 + $0x14] sm:$0xf]
        %v1329 = vld [vmem:[#allocation13 + $0x18] sm:$0xf]
        %v1330 = vld [vmem:[#allocation13 + $0x1c] sm:$0xf]
        %v1331 = vld [vmem:[#allocation13 + $0x20] sm:$0xf]
        %v1332 = vld [vmem:[#allocation13 + $0x24] sm:$0xf]
        %v1333 = vld [vmem:[#allocation13 + $0x28] sm:$0xf]
        %v1334 = vld [vmem:[#allocation13 + $0x2c] sm:$0xf]
        %v1335 = vld [vmem:[#allocation13 + $0x30] sm:$0xf]
        %v1336 = vld [vmem:[#allocation13 + $0x34] sm:$0xf]
        %v1337 = vld [vmem:[#allocation13 + $0x38] sm:$0xf]
        %v1338 = vld [vmem:[#allocation13 + $0x3c] sm:$0xf]
        %v1339 = vld [vmem:[#allocation13 + $0x40] sm:$0xf]
        %v1340 = vld [vmem:[#allocation13 + $0x44] sm:$0xf]
        %v1341 = vld [vmem:[#allocation13 + $0x48] sm:$0xf]
        %v1342 = vld [vmem:[#allocation13 + $0x4c] sm:$0xf]
        %v1343 = vld [vmem:[#allocation13 + $0x50] sm:$0xf]
        %v1344 = vld [vmem:[#allocation13 + $0x54] sm:$0xf]
        %v1345 = vld [vmem:[#allocation13 + $0x58] sm:$0xf]
        %v1346 = vld [vmem:[#allocation13 + $0x5c] sm:$0xf]
        %v1347 = vld [vmem:[#allocation13 + $0x60] sm:$0xf]
        %v1348 = vld [vmem:[#allocation13 + $0x64] sm:$0xf]
        %v1349 = vld [vmem:[#allocation13 + $0x68] sm:$0xf]
        %v1350 = vld [vmem:[#allocation13 + $0x6c] sm:$0xf]
        %v1351 = vld [vmem:[#allocation13 + $0x70] sm:$0xf]
        %v1352 = vld [vmem:[#allocation13 + $0x74] sm:$0xf]
        %v1353 = vld [vmem:[#allocation13 + $0x78] sm:$0xf]
        %v1354 = vld [vmem:[#allocation13 + $0x7c] sm:$0xf]
        %v1355 = vld [vmem:[%s11] sm:$0x1]
        %v1357 = vperm.slane %v1355, 0
        %v1391 = vunpack.c.l.b16 %v1323
        %v1392 = vunpack.c.l.b16 %v1324
        %v1393 = vunpack.c.l.b16 %v1325
        %v1394 = vunpack.c.l.b16 %v1326
        %v1395 = vunpack.c.l.b16 %v1327
        %v1396 = vunpack.c.l.b16 %v1328
        %v1397 = vunpack.c.l.b16 %v1329
        %v1398 = vunpack.c.l.b16 %v1330
        %v1399 = vunpack.c.l.b16 %v1331
        %v1400 = vunpack.c.l.b16 %v1332
        %v1401 = vunpack.c.l.b16 %v1333
        %v1402 = vunpack.c.l.b16 %v1334
        %v1403 = vunpack.c.l.b16 %v1335
        %v1404 = vunpack.c.l.b16 %v1336
        %v1405 = vunpack.c.l.b16 %v1337
        %v1406 = vunpack.c.l.b16 %v1338
        %v1407 = vunpack.c.l.b16 %v1339
        %v1408 = vunpack.c.l.b16 %v1340
        %v1409 = vunpack.c.l.b16 %v1341
        %v1410 = vunpack.c.l.b16 %v1342
        %v1411 = vunpack.c.l.b16 %v1343
        %v1412 = vunpack.c.l.b16 %v1344
        %v1413 = vunpack.c.l.b16 %v1345
        %v1414 = vunpack.c.l.b16 %v1346
        %v1415 = vunpack.c.l.b16 %v1347
        %v1416 = vunpack.c.l.b16 %v1348
        %v1417 = vunpack.c.l.b16 %v1349
        %v1418 = vunpack.c.l.b16 %v1350
        %v1419 = vunpack.c.l.b16 %v1351
        %v1420 = vunpack.c.l.b16 %v1352
        %v1421 = vunpack.c.l.b16 %v1353
        %v1422 = vunpack.c.l.b16 %v1354
        %v1423 = vpack.c.b16 %v1392, %v1391
        %v1424 = vpack.c.b16 %v1394, %v1393
        %v1425 = vpack.c.b16 %v1396, %v1395
        %v1426 = vpack.c.b16 %v1398, %v1397
        %v1427 = vpack.c.b16 %v1400, %v1399
        %v1428 = vpack.c.b16 %v1402, %v1401
        %v1429 = vpack.c.b16 %v1404, %v1403
        %v1430 = vpack.c.b16 %v1406, %v1405
        %v1431 = vpack.c.b16 %v1408, %v1407
        %v1432 = vpack.c.b16 %v1410, %v1409
        %v1433 = vpack.c.b16 %v1412, %v1411
        %v1434 = vpack.c.b16 %v1414, %v1413
        %v1435 = vpack.c.b16 %v1416, %v1415
        %v1436 = vpack.c.b16 %v1418, %v1417
        %v1437 = vpack.c.b16 %v1420, %v1419
        %v1438 = vpack.c.b16 %v1422, %v1421
        %1455 = vmatpush.bf16.msra.mxu0 %v1430
        %1456 = vmatpush.bf16.msra.mxu0 %v1429
        %1457 = vmatpush.bf16.msra.mxu0 %v1428
        %1458 = vmatpush.bf16.msra.mxu0 %v1427
        %1459 = vmatpush.bf16.msra.mxu0 %v1426
        %1460 = vmatpush.bf16.msra.mxu0 %v1425
        %1461 = vmatpush.bf16.msra.mxu0 %v1424
        %1462 = vmatpush.bf16.msra.mxu0 %v1423
        %1463 = vmatmul.bf16.gmra.mxu0 %v1321
        %v1464 = vpop.f32.mrf.mxu0
        %v1465 = vadd.f32 %v1357, %v1464
        %v1466 = vpop.f32.mrf.mxu0
        %1467 = vdwg.mxu0
        %1468 = vmatpush.bf16.msra.mxu0 %v1438
        %1469 = vmatpush.bf16.msra.mxu0 %v1437
        %1470 = vmatpush.bf16.msra.mxu0 %v1436
        %1471 = vmatpush.bf16.msra.mxu0 %v1435
        %1472 = vmatpush.bf16.msra.mxu0 %v1434
        %1473 = vmatpush.bf16.msra.mxu0 %v1433
        %1474 = vmatpush.bf16.msra.mxu0 %v1432
        %1475 = vmatpush.bf16.msra.mxu0 %v1431
        %1476 = vmatmul.bf16.gmra.mxu0 %v1322
        %v1477 = vpop.f32.mrf.mxu0
        %v1478 = vadd.f32 %v1465, %v1477
        %v1479 = vpop.f32.mrf.mxu0
        %1480 = vdwg.mxu0
        %v1481 = vadd.f32 %v1156, %v1478
        %1482 = vst [vmem:[%s545] sm:$0xff] %v1481
        %s1483 = sand.u32 %s304, 1
        %s1484 = scalar_lea.sflag [#allocation4], %s1483
        %s1485 = sand.u32 %s304, 1
        %s1486 = smul.addr %s1485, 8
        %s1487 = scalar_lea.vmem [#allocation14], %s1486
        // Predicated region
        $region97: #{tpu_custom_call.1} parent=67 // pred_check
          %p1488 = pneg %p314
        $region98: #{tpu_custom_call.1} parent=67 // pred_check_branch
          %1490 = sbr.rel (%p1488) target = $region100
        $region99: #{tpu_custom_call.1} parent=67 // pred_region
          %1492 = vsyncadd %s1484, 0
          %s1493 = smul.addr %s34, 8
          %s1494 = scalar_lea.hbm %s12, %s1493
          %s1496 = sshll.u32 %s1487, 4
          %s1497 = int_to_ptr.vmem [resolvable:$true] %s1496
          %s1498 = sshll.u32 %s1494, 4
          %s1499 = int_to_ptr.hbm [resolvable:$true] %s1498
          %1501 = dma.vmem_to_hbm [thread:$0]  %s1497, 128, %s1499, %s1484
        $region100: #{tpu_custom_call.1} parent=67 // pred_fallthru
          _
      $region68: #{tpu_custom_call.1} parent=5 // pred_fallthru
        _
      %p1502 = scmp.le.s32.totalorder 2, %s29
      // Predicated region
      $region101: #{tpu_custom_call.1} parent=5 // pred_check
        %p1503 = pneg %p1502
      $region102: #{tpu_custom_call.1} parent=5 // pred_check_branch
        %1505 = sbr.rel (%p1503) target = $region104
      $region103: #{tpu_custom_call.1} parent=5 // pred_region
        %s1506 = ssub.s32 %s29, 2
        // Predicated region
        $region105: #{tpu_custom_call.1} parent=103 // pred_check
          %p1507 = pneg %p320
        $region106: #{tpu_custom_call.1} parent=103 // pred_check_branch
          %1509 = sbr.rel (%p1507) target = $region108
        $region107: #{tpu_custom_call.1} parent=103 // pred_region
          %s1510 = sand.u32 %s305, 1
          %s1511 = scalar_lea.sflag [#allocation4], %s1510
          %s1512 = sand.u32 %s305, 1
          %s1513 = smul.addr %s1512, 8
          %s1514 = scalar_lea.vmem [#allocation14], %s1513
          %1516 = dma.done %s1511, 128
        $region108: #{tpu_custom_call.1} parent=103 // pred_fallthru
          _
      $region104: #{tpu_custom_call.1} parent=5 // pred_fallthru
        _
    $region6: #{tpu_custom_call.1} parent=1 // loop_footer
      %s33 = sadd.s32 1, %s29
    $region7: #{tpu_custom_call.1} parent=1 // loop_footer_branch
      %28 = sbr.rel target = $region3
    $region8: #{tpu_custom_call.1} parent=1 // loop_exit
      _
    %1517 = vsyncpa [#allocation3], 1
    %s1518 = scalar_lea.sflag [#allocation3], 1
    %1519 = vsyncpa %s1518, 1
    %1520 = vsyncpa [#allocation6], 1
    %s1521 = scalar_lea.sflag [#allocation6], 1
    %1522 = vsyncpa %s1521, 1
    %1523 = vsyncpa [#allocation9], 1
    %1524 = vsyncpa [#allocation12], 1
    %1525 = vsyncpa [#allocation4], 1
    %s1526 = scalar_lea.sflag [#allocation4], 1
    %1527 = vsyncpa %s1526, 1

</llo_original>
